<compile_context>
chip_gen: v6e
topology: v6e:2x2x1
jax: 0.10.0
libtpu: 0.0.40
codegen_flags: <defaults>
</compile_context>

<pallas_src>
import jax
import jax.numpy as jnp
import numpy as np
from jax import lax
from jax.experimental import pallas as pl
from jax.experimental.pallas import tpu as pltpu

SEQ_LEN = 8
N_FEATURES = 1
EMBEDDING_DIM = 32
HIDDEN_DIM = 2 * EMBEDDING_DIM      # 64
H1 = HIDDEN_DIM                     # 64  (layer-1 hidden)
H2 = EMBEDDING_DIM                  # 32  (layer-2 hidden)
G = 128                             # fused per-gate group width: [h1(64)|h2(32)|pad(32)]
NOUT = 4 * G                        # 512 fused gate columns
K = G                               # fused LHS / weight-row width (128)


def encoder_kernel(x_ref, wip_ref, bcat_ref, wf_ref, out_ref):
    """x_ref: (SEQ_LEN+1, 1) f32 (last row zero); wip_ref/bcat_ref: (1, NOUT) f32;
    wf_ref: (K, NOUT) bf16 fused recurrent weight; out_ref: (1, H2) f32."""
    wf = wf_ref[...]                                            # (128, 512) bf16

    # Per-step additive term (input projection + biases) for all steps at once.
    # n_features == 1  =>  outer-product broadcast, no K=1 matmul.
    xb = x_ref[...] * wip_ref[...] + bcat_ref[...]              # (9, 512) f32

    # Mask keeping only layer-1 lanes (used once, in the prologue).
    lane = lax.broadcasted_iota(jnp.int32, (1, G), 1)
    l1mask = (lane < H1).astype(jnp.float32)                    # (1, 128)

    # ---- prologue: time step 0 (recurrent term is 0, layer-2 still at rest) ----
    sig = jax.nn.sigmoid(xb[0:1, :])                            # (1, 512)
    ccat = (sig[:, 0:G] * (2.0 * sig[:, 2 * G:3 * G] - 1.0)) * l1mask
    hcat = sig[:, 3 * G:4 * G] * jnp.tanh(ccat)                 # [h1(0) | 0 | 0]

    # ---- steady state: one fused matmul per step, layer-2 skewed by one step ----
    # Iteration t consumes hcat = [h1(t-1) | h2(t-2) | 0] and produces
    # [h1(t) | h2(t-1) | 0].  Iteration t == SEQ_LEN is the layer-2 epilogue
    # (xb row SEQ_LEN is bias-only; the layer-1 lanes it writes are ignored).
    for t in range(1, SEQ_LEN + 1):
        mat = jnp.dot(hcat.astype(jnp.bfloat16), wf,
                      preferred_element_type=jnp.float32)       # (1, 512) f32
        g = mat + xb[t:t + 1, :]
        sig = jax.nn.sigmoid(g)
        i_g = sig[:, 0:G]
        f_g = sig[:, G:2 * G]
        ch_g = 2.0 * sig[:, 2 * G:3 * G] - 1.0                  # == tanh(preact)
        o_g = sig[:, 3 * G:4 * G]
        ccat = f_g * ccat + i_g * ch_g
        hcat = o_g * jnp.tanh(ccat)

    out_ref[...] = hcat[:, H1:H1 + H2]                          # h2(SEQ_LEN-1)


def _pack_fused(params):
    """Pack the two LSTMs into the fused skewed layout.

    Column layout (per gate q in [i, f, ch, o]): cols q*128+[0:64] = layer-1 gate,
    q*128+[64:96] = layer-2 gate, q*128+[96:128] = zero pad.
    Row layout of Wf: rows 0:64 = h1 (carries w_hh1 and w_ih2), rows 64:96 = h2
    (carries w_hh2), rows 96:128 = zero.  The c-hat gate group (cols 256:384) of
    every contribution is pre-scaled by 2 for the tanh(x) = 2*sigmoid(2x)-1 trick
    (exact in bf16)."""
    w_ih1, w_hh1 = params["w_ih1"], params["w_hh1"]
    w_ih2, w_hh2 = params["w_ih2"], params["w_hh2"]
    b1, b2 = params["b1"], params["b2"]

    wf = jnp.zeros((K, NOUT), jnp.float32)
    wip = jnp.zeros((1, NOUT), jnp.float32)
    bc = jnp.zeros((1, NOUT), jnp.float32)
    for q in range(4):
        c0 = q * G
        # layer-1 gate q
        wf = wf.at[0:H1, c0:c0 + H1].set(w_hh1[:, q * H1:(q + 1) * H1])
        wip = wip.at[:, c0:c0 + H1].set(w_ih1[:, q * H1:(q + 1) * H1])
        bc = bc.at[:, c0:c0 + H1].set(b1[:, q * H1:(q + 1) * H1])
        # layer-2 gate q
        wf = wf.at[0:H1, c0 + H1:c0 + H1 + H2].set(w_ih2[:, q * H2:(q + 1) * H2])
        wf = wf.at[H1:H1 + H2, c0 + H1:c0 + H1 + H2].set(w_hh2[:, q * H2:(q + 1) * H2])
        bc = bc.at[:, c0 + H1:c0 + H1 + H2].set(b2[:, q * H2:(q + 1) * H2])
    # scale the c-hat gate group by 2 (pad cols are zero, scaling harmless)
    wf = wf.at[:, 2 * G:3 * G].multiply(2.0)
    wip = wip.at[:, 2 * G:3 * G].multiply(2.0)
    bc = bc.at[:, 2 * G:3 * G].multiply(2.0)
    return wf.astype(jnp.bfloat16), wip, bc


def encoder_forward(x, params):
    assert N_FEATURES == 1, (
        "hidden_n.reshape((n_features, embedding_dim)) requires n_features == 1")
    assert H1 + H2 <= G

    x = x.reshape(SEQ_LEN, N_FEATURES).astype(jnp.float32)
    # Row SEQ_LEN is the bias-only epilogue row (layer-2 last step has no x input).
    x_pad = jnp.concatenate([x, jnp.zeros((1, N_FEATURES), jnp.float32)], axis=0)

    wf, wip, bc = _pack_fused(params)

    vmem = pl.BlockSpec(memory_space=pltpu.MemorySpace.VMEM)
    out = pl.pallas_call(
        encoder_kernel,
        out_shape=jax.ShapeDtypeStruct((1, EMBEDDING_DIM), jnp.float32),
        in_specs=[vmem] * 4,
        out_specs=vmem,
    )(x_pad, wip, bc, wf)
    return out.reshape(N_FEATURES, EMBEDDING_DIM)


def encoder_reference(x, params):
    """Pure-JAX f32 reference of the same forward pass (PyTorch semantics)."""
    x = x.reshape(SEQ_LEN, N_FEATURES).astype(jnp.float32)

    def gates(g, H):
        i = jax.nn.sigmoid(g[:, 0:H])
        f = jax.nn.sigmoid(g[:, H:2 * H])
        c_hat = jnp.tanh(g[:, 2 * H:3 * H])
        o = jax.nn.sigmoid(g[:, 3 * H:4 * H])
        return i, f, c_hat, o

    def lstm(seq, w_ih, w_hh, b, H):
        def step(carry, xt):
            h, c = carry
            g = xt[None, :] @ w_ih + h @ w_hh + b
            i, f, ch, o = gates(g, H)
            c = f * c + i * ch
            h = o * jnp.tanh(c)
            return (h, c), h[0]
        (h, _), ys = lax.scan(step, (jnp.zeros((1, H), jnp.float32),
                                     jnp.zeros((1, H), jnp.float32)), seq)
        return ys, h

    ys1, _ = lstm(x, params["w_ih1"], params["w_hh1"], params["b1"], HIDDEN_DIM)
    _, h2 = lstm(ys1, params["w_ih2"], params["w_hh2"], params["b2"], EMBEDDING_DIM)
    return h2.reshape(N_FEATURES, EMBEDDING_DIM)


def init_params(key):
    k = jax.random.split(key, 8)
    s1 = 1.0 / float(np.sqrt(HIDDEN_DIM))
    s2 = 1.0 / float(np.sqrt(EMBEDDING_DIM))
    u = lambda kk, shape, s: jax.random.uniform(kk, shape, jnp.float32, -s, s)
    return dict(
        # layer 1: LSTM(n_features -> HIDDEN_DIM); weights stored transposed
        # vs PyTorch, i.e. (input_dim, 4*hidden); gate order [i, f, g, o];
        # b = b_ih + b_hh pre-summed.
        w_ih1=u(k[0], (N_FEATURES, 4 * HIDDEN_DIM), s1),
        w_hh1=u(k[1], (HIDDEN_DIM, 4 * HIDDEN_DIM), s1),
        b1=u(k[2], (1, 4 * HIDDEN_DIM), s1) + u(k[3], (1, 4 * HIDDEN_DIM), s1),
        # layer 2: LSTM(HIDDEN_DIM -> EMBEDDING_DIM)
        w_ih2=u(k[4], (HIDDEN_DIM, 4 * EMBEDDING_DIM), s2),
        w_hh2=u(k[5], (EMBEDDING_DIM, 4 * EMBEDDING_DIM), s2),
        b2=u(k[6], (1, 4 * EMBEDDING_DIM), s2) + u(k[7], (1, 4 * EMBEDDING_DIM), s2),
    )


if __name__ == "__main__":
    key = jax.random.PRNGKey(0)
    kx, kp = jax.random.split(key)
    x = jax.random.normal(kx, (SEQ_LEN, N_FEATURES), jnp.float32)
    params = init_params(kp)

    out = jax.block_until_ready(encoder_forward(x, params))
    ref = jax.block_until_ready(encoder_reference(x, params))

    assert out.shape == (N_FEATURES, EMBEDDING_DIM)
    # bf16 MXU operands / bf16 recurrent hidden state (f32 accumulation)
    # => relaxed tolerance vs the f32 reference.
    np.testing.assert_allclose(np.asarray(out), np.asarray(ref), rtol=2e-2, atol=2e-2)
    print("KERNEL_OK")
</pallas_src>

<mosaic_0001>
module attributes {stable_mosaic.version = 11 : i64} {
  func.func @encoder_kernel(%arg0: memref<9x1xf32, #tpu.memory_space<vmem>>, %arg1: memref<1x512xf32, #tpu.memory_space<vmem>>, %arg2: memref<1x512xf32, #tpu.memory_space<vmem>>, %arg3: memref<128x512xbf16, #tpu.memory_space<vmem>>, %arg4: memref<1x32xf32, #tpu.memory_space<vmem>>) attributes {dimension_semantics = [], scalar_prefetch = 0 : i64, scratch_operands = 0 : i64, tpu.core_type = #tpu.core_type<tc>} {
    %c0 = arith.constant 0 : index
    %c0_0 = arith.constant 0 : index
    %0 = vector.load %arg3[%c0, %c0_0] : memref<128x512xbf16, #tpu.memory_space<vmem>>, vector<128x512xbf16>
    %c0_1 = arith.constant 0 : index
    %c0_2 = arith.constant 0 : index
    %1 = vector.load %arg0[%c0_1, %c0_2] : memref<9x1xf32, #tpu.memory_space<vmem>>, vector<9x1xf32>
    %c0_3 = arith.constant 0 : index
    %c0_4 = arith.constant 0 : index
    %2 = vector.load %arg1[%c0_3, %c0_4] : memref<1x512xf32, #tpu.memory_space<vmem>>, vector<1x512xf32>
    %3 = vector.broadcast %1 : vector<9x1xf32> to vector<9x512xf32>
    %4 = vector.broadcast %2 : vector<1x512xf32> to vector<9x512xf32>
    %5 = arith.mulf %3, %4 : vector<9x512xf32>
    %c0_5 = arith.constant 0 : index
    %c0_6 = arith.constant 0 : index
    %6 = vector.load %arg2[%c0_5, %c0_6] : memref<1x512xf32, #tpu.memory_space<vmem>>, vector<1x512xf32>
    %7 = vector.broadcast %6 : vector<1x512xf32> to vector<9x512xf32>
    %8 = arith.addf %5, %7 : vector<9x512xf32>
    %9 = tpu.iota {dimensions = array<i32: 1>} : vector<1x128xi32>
    %c64_i32 = arith.constant 64 : i32
    %10 = vector.broadcast %c64_i32 : i32 to vector<1x128xi32>
    %11 = arith.cmpi slt, %9, %10 : vector<1x128xi32>
    %12 = arith.extui %11 : vector<1x128xi1> to vector<1x128xi32>
    %13 = arith.sitofp %12 : vector<1x128xi32> to vector<1x128xf32>
    %14 = vector.extract_strided_slice %8 {offsets = [0, 0], sizes = [1, 512], strides = [1, 1]} : vector<9x512xf32> to vector<1x512xf32>
    %15 = arith.negf %14 : vector<1x512xf32>
    %16 = math.exp %15 : vector<1x512xf32>
    %cst = arith.constant 1.000000e+00 : f32
    %17 = vector.broadcast %cst : f32 to vector<1x512xf32>
    %18 = arith.addf %17, %16 : vector<1x512xf32>
    %19 = arith.divf %17, %18 : vector<1x512xf32>
    %20 = vector.extract_strided_slice %19 {offsets = [0, 0], sizes = [1, 128], strides = [1, 1]} : vector<1x512xf32> to vector<1x128xf32>
    %21 = vector.extract_strided_slice %19 {offsets = [0, 256], sizes = [1, 128], strides = [1, 1]} : vector<1x512xf32> to vector<1x128xf32>
    %cst_7 = arith.constant 2.000000e+00 : f32
    %22 = vector.broadcast %cst_7 : f32 to vector<1x128xf32>
    %23 = arith.mulf %22, %21 : vector<1x128xf32>
    %cst_8 = arith.constant 1.000000e+00 : f32
    %24 = vector.broadcast %cst_8 : f32 to vector<1x128xf32>
    %25 = arith.subf %23, %24 : vector<1x128xf32>
    %26 = arith.mulf %20, %25 : vector<1x128xf32>
    %27 = arith.mulf %26, %13 : vector<1x128xf32>
    %28 = vector.extract_strided_slice %19 {offsets = [0, 384], sizes = [1, 128], strides = [1, 1]} : vector<1x512xf32> to vector<1x128xf32>
    %29 = math.tanh %27 : vector<1x128xf32>
    %30 = arith.mulf %28, %29 : vector<1x128xf32>
    %31 = arith.truncf %30 : vector<1x128xf32> to vector<1x128xbf16>
    %cst_9 = arith.constant dense<0.000000e+00> : vector<1x512xf32>
    %32 = tpu.matmul %31, %0, %cst_9 {dimension_numbers = #tpu.dot_dimension_numbers<[1], [0], [0], [1], [0, 0, 1, 1], [], []>} : vector<1x128xbf16>, vector<128x512xbf16>, vector<1x512xf32> -> vector<1x512xf32>
    %33 = vector.extract_strided_slice %8 {offsets = [1, 0], sizes = [1, 512], strides = [1, 1]} : vector<9x512xf32> to vector<1x512xf32>
    %34 = arith.addf %32, %33 : vector<1x512xf32>
    %35 = arith.negf %34 : vector<1x512xf32>
    %36 = math.exp %35 : vector<1x512xf32>
    %cst_10 = arith.constant 1.000000e+00 : f32
    %37 = vector.broadcast %cst_10 : f32 to vector<1x512xf32>
    %38 = arith.addf %37, %36 : vector<1x512xf32>
    %39 = arith.divf %37, %38 : vector<1x512xf32>
    %40 = vector.extract_strided_slice %39 {offsets = [0, 0], sizes = [1, 128], strides = [1, 1]} : vector<1x512xf32> to vector<1x128xf32>
    %41 = vector.extract_strided_slice %39 {offsets = [0, 128], sizes = [1, 128], strides = [1, 1]} : vector<1x512xf32> to vector<1x128xf32>
    %42 = vector.extract_strided_slice %39 {offsets = [0, 256], sizes = [1, 128], strides = [1, 1]} : vector<1x512xf32> to vector<1x128xf32>
    %cst_11 = arith.constant 2.000000e+00 : f32
    %43 = vector.broadcast %cst_11 : f32 to vector<1x128xf32>
    %44 = arith.mulf %43, %42 : vector<1x128xf32>
    %cst_12 = arith.constant 1.000000e+00 : f32
    %45 = vector.broadcast %cst_12 : f32 to vector<1x128xf32>
    %46 = arith.subf %44, %45 : vector<1x128xf32>
    %47 = vector.extract_strided_slice %39 {offsets = [0, 384], sizes = [1, 128], strides = [1, 1]} : vector<1x512xf32> to vector<1x128xf32>
    %48 = arith.mulf %41, %27 : vector<1x128xf32>
    %49 = arith.mulf %40, %46 : vector<1x128xf32>
    %50 = arith.addf %48, %49 : vector<1x128xf32>
    %51 = math.tanh %50 : vector<1x128xf32>
    %52 = arith.mulf %47, %51 : vector<1x128xf32>
    %53 = arith.truncf %52 : vector<1x128xf32> to vector<1x128xbf16>
    %cst_13 = arith.constant dense<0.000000e+00> : vector<1x512xf32>
    %54 = tpu.matmul %53, %0, %cst_13 {dimension_numbers = #tpu.dot_dimension_numbers<[1], [0], [0], [1], [0, 0, 1, 1], [], []>} : vector<1x128xbf16>, vector<128x512xbf16>, vector<1x512xf32> -> vector<1x512xf32>
    %55 = vector.extract_strided_slice %8 {offsets = [2, 0], sizes = [1, 512], strides = [1, 1]} : vector<9x512xf32> to vector<1x512xf32>
    %56 = arith.addf %54, %55 : vector<1x512xf32>
    %57 = arith.negf %56 : vector<1x512xf32>
    %58 = math.exp %57 : vector<1x512xf32>
    %cst_14 = arith.constant 1.000000e+00 : f32
    %59 = vector.broadcast %cst_14 : f32 to vector<1x512xf32>
    %60 = arith.addf %59, %58 : vector<1x512xf32>
    %61 = arith.divf %59, %60 : vector<1x512xf32>
    %62 = vector.extract_strided_slice %61 {offsets = [0, 0], sizes = [1, 128], strides = [1, 1]} : vector<1x512xf32> to vector<1x128xf32>
    %63 = vector.extract_strided_slice %61 {offsets = [0, 128], sizes = [1, 128], strides = [1, 1]} : vector<1x512xf32> to vector<1x128xf32>
    %64 = vector.extract_strided_slice %61 {offsets = [0, 256], sizes = [1, 128], strides = [1, 1]} : vector<1x512xf32> to vector<1x128xf32>
    %cst_15 = arith.constant 2.000000e+00 : f32
    %65 = vector.broadcast %cst_15 : f32 to vector<1x128xf32>
    %66 = arith.mulf %65, %64 : vector<1x128xf32>
    %cst_16 = arith.constant 1.000000e+00 : f32
    %67 = vector.broadcast %cst_16 : f32 to vector<1x128xf32>
    %68 = arith.subf %66, %67 : vector<1x128xf32>
    %69 = vector.extract_strided_slice %61 {offsets = [0, 384], sizes = [1, 128], strides = [1, 1]} : vector<1x512xf32> to vector<1x128xf32>
    %70 = arith.mulf %63, %50 : vector<1x128xf32>
    %71 = arith.mulf %62, %68 : vector<1x128xf32>
    %72 = arith.addf %70, %71 : vector<1x128xf32>
    %73 = math.tanh %72 : vector<1x128xf32>
    %74 = arith.mulf %69, %73 : vector<1x128xf32>
    %75 = arith.truncf %74 : vector<1x128xf32> to vector<1x128xbf16>
    %cst_17 = arith.constant dense<0.000000e+00> : vector<1x512xf32>
    %76 = tpu.matmul %75, %0, %cst_17 {dimension_numbers = #tpu.dot_dimension_numbers<[1], [0], [0], [1], [0, 0, 1, 1], [], []>} : vector<1x128xbf16>, vector<128x512xbf16>, vector<1x512xf32> -> vector<1x512xf32>
    %77 = vector.extract_strided_slice %8 {offsets = [3, 0], sizes = [1, 512], strides = [1, 1]} : vector<9x512xf32> to vector<1x512xf32>
    %78 = arith.addf %76, %77 : vector<1x512xf32>
    %79 = arith.negf %78 : vector<1x512xf32>
    %80 = math.exp %79 : vector<1x512xf32>
    %cst_18 = arith.constant 1.000000e+00 : f32
    %81 = vector.broadcast %cst_18 : f32 to vector<1x512xf32>
    %82 = arith.addf %81, %80 : vector<1x512xf32>
    %83 = arith.divf %81, %82 : vector<1x512xf32>
    %84 = vector.extract_strided_slice %83 {offsets = [0, 0], sizes = [1, 128], strides = [1, 1]} : vector<1x512xf32> to vector<1x128xf32>
    %85 = vector.extract_strided_slice %83 {offsets = [0, 128], sizes = [1, 128], strides = [1, 1]} : vector<1x512xf32> to vector<1x128xf32>
    %86 = vector.extract_strided_slice %83 {offsets = [0, 256], sizes = [1, 128], strides = [1, 1]} : vector<1x512xf32> to vector<1x128xf32>
    %cst_19 = arith.constant 2.000000e+00 : f32
    %87 = vector.broadcast %cst_19 : f32 to vector<1x128xf32>
    %88 = arith.mulf %87, %86 : vector<1x128xf32>
    %cst_20 = arith.constant 1.000000e+00 : f32
    %89 = vector.broadcast %cst_20 : f32 to vector<1x128xf32>
    %90 = arith.subf %88, %89 : vector<1x128xf32>
    %91 = vector.extract_strided_slice %83 {offsets = [0, 384], sizes = [1, 128], strides = [1, 1]} : vector<1x512xf32> to vector<1x128xf32>
    %92 = arith.mulf %85, %72 : vector<1x128xf32>
    %93 = arith.mulf %84, %90 : vector<1x128xf32>
    %94 = arith.addf %92, %93 : vector<1x128xf32>
    %95 = math.tanh %94 : vector<1x128xf32>
    %96 = arith.mulf %91, %95 : vector<1x128xf32>
    %97 = arith.truncf %96 : vector<1x128xf32> to vector<1x128xbf16>
    %cst_21 = arith.constant dense<0.000000e+00> : vector<1x512xf32>
    %98 = tpu.matmul %97, %0, %cst_21 {dimension_numbers = #tpu.dot_dimension_numbers<[1], [0], [0], [1], [0, 0, 1, 1], [], []>} : vector<1x128xbf16>, vector<128x512xbf16>, vector<1x512xf32> -> vector<1x512xf32>
    %99 = vector.extract_strided_slice %8 {offsets = [4, 0], sizes = [1, 512], strides = [1, 1]} : vector<9x512xf32> to vector<1x512xf32>
    %100 = arith.addf %98, %99 : vector<1x512xf32>
    %101 = arith.negf %100 : vector<1x512xf32>
    %102 = math.exp %101 : vector<1x512xf32>
    %cst_22 = arith.constant 1.000000e+00 : f32
    %103 = vector.broadcast %cst_22 : f32 to vector<1x512xf32>
    %104 = arith.addf %103, %102 : vector<1x512xf32>
    %105 = arith.divf %103, %104 : vector<1x512xf32>
    %106 = vector.extract_strided_slice %105 {offsets = [0, 0], sizes = [1, 128], strides = [1, 1]} : vector<1x512xf32> to vector<1x128xf32>
    %107 = vector.extract_strided_slice %105 {offsets = [0, 128], sizes = [1, 128], strides = [1, 1]} : vector<1x512xf32> to vector<1x128xf32>
    %108 = vector.extract_strided_slice %105 {offsets = [0, 256], sizes = [1, 128], strides = [1, 1]} : vector<1x512xf32> to vector<1x128xf32>
    %cst_23 = arith.constant 2.000000e+00 : f32
    %109 = vector.broadcast %cst_23 : f32 to vector<1x128xf32>
    %110 = arith.mulf %109, %108 : vector<1x128xf32>
    %cst_24 = arith.constant 1.000000e+00 : f32
    %111 = vector.broadcast %cst_24 : f32 to vector<1x128xf32>
    %112 = arith.subf %110, %111 : vector<1x128xf32>
    %113 = vector.extract_strided_slice %105 {offsets = [0, 384], sizes = [1, 128], strides = [1, 1]} : vector<1x512xf32> to vector<1x128xf32>
    %114 = arith.mulf %107, %94 : vector<1x128xf32>
    %115 = arith.mulf %106, %112 : vector<1x128xf32>
    %116 = arith.addf %114, %115 : vector<1x128xf32>
    %117 = math.tanh %116 : vector<1x128xf32>
    %118 = arith.mulf %113, %117 : vector<1x128xf32>
    %119 = arith.truncf %118 : vector<1x128xf32> to vector<1x128xbf16>
    %cst_25 = arith.constant dense<0.000000e+00> : vector<1x512xf32>
    %120 = tpu.matmul %119, %0, %cst_25 {dimension_numbers = #tpu.dot_dimension_numbers<[1], [0], [0], [1], [0, 0, 1, 1], [], []>} : vector<1x128xbf16>, vector<128x512xbf16>, vector<1x512xf32> -> vector<1x512xf32>
    %121 = vector.extract_strided_slice %8 {offsets = [5, 0], sizes = [1, 512], strides = [1, 1]} : vector<9x512xf32> to vector<1x512xf32>
    %122 = arith.addf %120, %121 : vector<1x512xf32>
    %123 = arith.negf %122 : vector<1x512xf32>
    %124 = math.exp %123 : vector<1x512xf32>
    %cst_26 = arith.constant 1.000000e+00 : f32
    %125 = vector.broadcast %cst_26 : f32 to vector<1x512xf32>
    %126 = arith.addf %125, %124 : vector<1x512xf32>
    %127 = arith.divf %125, %126 : vector<1x512xf32>
    %128 = vector.extract_strided_slice %127 {offsets = [0, 0], sizes = [1, 128], strides = [1, 1]} : vector<1x512xf32> to vector<1x128xf32>
    %129 = vector.extract_strided_slice %127 {offsets = [0, 128], sizes = [1, 128], strides = [1, 1]} : vector<1x512xf32> to vector<1x128xf32>
    %130 = vector.extract_strided_slice %127 {offsets = [0, 256], sizes = [1, 128], strides = [1, 1]} : vector<1x512xf32> to vector<1x128xf32>
    %cst_27 = arith.constant 2.000000e+00 : f32
    %131 = vector.broadcast %cst_27 : f32 to vector<1x128xf32>
    %132 = arith.mulf %131, %130 : vector<1x128xf32>
    %cst_28 = arith.constant 1.000000e+00 : f32
    %133 = vector.broadcast %cst_28 : f32 to vector<1x128xf32>
    %134 = arith.subf %132, %133 : vector<1x128xf32>
    %135 = vector.extract_strided_slice %127 {offsets = [0, 384], sizes = [1, 128], strides = [1, 1]} : vector<1x512xf32> to vector<1x128xf32>
    %136 = arith.mulf %129, %116 : vector<1x128xf32>
    %137 = arith.mulf %128, %134 : vector<1x128xf32>
    %138 = arith.addf %136, %137 : vector<1x128xf32>
    %139 = math.tanh %138 : vector<1x128xf32>
    %140 = arith.mulf %135, %139 : vector<1x128xf32>
    %141 = arith.truncf %140 : vector<1x128xf32> to vector<1x128xbf16>
    %cst_29 = arith.constant dense<0.000000e+00> : vector<1x512xf32>
    %142 = tpu.matmul %141, %0, %cst_29 {dimension_numbers = #tpu.dot_dimension_numbers<[1], [0], [0], [1], [0, 0, 1, 1], [], []>} : vector<1x128xbf16>, vector<128x512xbf16>, vector<1x512xf32> -> vector<1x512xf32>
    %143 = vector.extract_strided_slice %8 {offsets = [6, 0], sizes = [1, 512], strides = [1, 1]} : vector<9x512xf32> to vector<1x512xf32>
    %144 = arith.addf %142, %143 : vector<1x512xf32>
    %145 = arith.negf %144 : vector<1x512xf32>
    %146 = math.exp %145 : vector<1x512xf32>
    %cst_30 = arith.constant 1.000000e+00 : f32
    %147 = vector.broadcast %cst_30 : f32 to vector<1x512xf32>
    %148 = arith.addf %147, %146 : vector<1x512xf32>
    %149 = arith.divf %147, %148 : vector<1x512xf32>
    %150 = vector.extract_strided_slice %149 {offsets = [0, 0], sizes = [1, 128], strides = [1, 1]} : vector<1x512xf32> to vector<1x128xf32>
    %151 = vector.extract_strided_slice %149 {offsets = [0, 128], sizes = [1, 128], strides = [1, 1]} : vector<1x512xf32> to vector<1x128xf32>
    %152 = vector.extract_strided_slice %149 {offsets = [0, 256], sizes = [1, 128], strides = [1, 1]} : vector<1x512xf32> to vector<1x128xf32>
    %cst_31 = arith.constant 2.000000e+00 : f32
    %153 = vector.broadcast %cst_31 : f32 to vector<1x128xf32>
    %154 = arith.mulf %153, %152 : vector<1x128xf32>
    %cst_32 = arith.constant 1.000000e+00 : f32
    %155 = vector.broadcast %cst_32 : f32 to vector<1x128xf32>
    %156 = arith.subf %154, %155 : vector<1x128xf32>
    %157 = vector.extract_strided_slice %149 {offsets = [0, 384], sizes = [1, 128], strides = [1, 1]} : vector<1x512xf32> to vector<1x128xf32>
    %158 = arith.mulf %151, %138 : vector<1x128xf32>
    %159 = arith.mulf %150, %156 : vector<1x128xf32>
    %160 = arith.addf %158, %159 : vector<1x128xf32>
    %161 = math.tanh %160 : vector<1x128xf32>
    %162 = arith.mulf %157, %161 : vector<1x128xf32>
    %163 = arith.truncf %162 : vector<1x128xf32> to vector<1x128xbf16>
    %cst_33 = arith.constant dense<0.000000e+00> : vector<1x512xf32>
    %164 = tpu.matmul %163, %0, %cst_33 {dimension_numbers = #tpu.dot_dimension_numbers<[1], [0], [0], [1], [0, 0, 1, 1], [], []>} : vector<1x128xbf16>, vector<128x512xbf16>, vector<1x512xf32> -> vector<1x512xf32>
    %165 = vector.extract_strided_slice %8 {offsets = [7, 0], sizes = [1, 512], strides = [1, 1]} : vector<9x512xf32> to vector<1x512xf32>
    %166 = arith.addf %164, %165 : vector<1x512xf32>
    %167 = arith.negf %166 : vector<1x512xf32>
    %168 = math.exp %167 : vector<1x512xf32>
    %cst_34 = arith.constant 1.000000e+00 : f32
    %169 = vector.broadcast %cst_34 : f32 to vector<1x512xf32>
    %170 = arith.addf %169, %168 : vector<1x512xf32>
    %171 = arith.divf %169, %170 : vector<1x512xf32>
    %172 = vector.extract_strided_slice %171 {offsets = [0, 0], sizes = [1, 128], strides = [1, 1]} : vector<1x512xf32> to vector<1x128xf32>
    %173 = vector.extract_strided_slice %171 {offsets = [0, 128], sizes = [1, 128], strides = [1, 1]} : vector<1x512xf32> to vector<1x128xf32>
    %174 = vector.extract_strided_slice %171 {offsets = [0, 256], sizes = [1, 128], strides = [1, 1]} : vector<1x512xf32> to vector<1x128xf32>
    %cst_35 = arith.constant 2.000000e+00 : f32
    %175 = vector.broadcast %cst_35 : f32 to vector<1x128xf32>
    %176 = arith.mulf %175, %174 : vector<1x128xf32>
    %cst_36 = arith.constant 1.000000e+00 : f32
    %177 = vector.broadcast %cst_36 : f32 to vector<1x128xf32>
    %178 = arith.subf %176, %177 : vector<1x128xf32>
    %179 = vector.extract_strided_slice %171 {offsets = [0, 384], sizes = [1, 128], strides = [1, 1]} : vector<1x512xf32> to vector<1x128xf32>
    %180 = arith.mulf %173, %160 : vector<1x128xf32>
    %181 = arith.mulf %172, %178 : vector<1x128xf32>
    %182 = arith.addf %180, %181 : vector<1x128xf32>
    %183 = math.tanh %182 : vector<1x128xf32>
    %184 = arith.mulf %179, %183 : vector<1x128xf32>
    %185 = arith.truncf %184 : vector<1x128xf32> to vector<1x128xbf16>
    %cst_37 = arith.constant dense<0.000000e+00> : vector<1x512xf32>
    %186 = tpu.matmul %185, %0, %cst_37 {dimension_numbers = #tpu.dot_dimension_numbers<[1], [0], [0], [1], [0, 0, 1, 1], [], []>} : vector<1x128xbf16>, vector<128x512xbf16>, vector<1x512xf32> -> vector<1x512xf32>
    %187 = vector.extract_strided_slice %8 {offsets = [8, 0], sizes = [1, 512], strides = [1, 1]} : vector<9x512xf32> to vector<1x512xf32>
    %188 = arith.addf %186, %187 : vector<1x512xf32>
    %189 = arith.negf %188 : vector<1x512xf32>
    %190 = math.exp %189 : vector<1x512xf32>
    %cst_38 = arith.constant 1.000000e+00 : f32
    %191 = vector.broadcast %cst_38 : f32 to vector<1x512xf32>
    %192 = arith.addf %191, %190 : vector<1x512xf32>
    %193 = arith.divf %191, %192 : vector<1x512xf32>
    %194 = vector.extract_strided_slice %193 {offsets = [0, 0], sizes = [1, 128], strides = [1, 1]} : vector<1x512xf32> to vector<1x128xf32>
    %195 = vector.extract_strided_slice %193 {offsets = [0, 128], sizes = [1, 128], strides = [1, 1]} : vector<1x512xf32> to vector<1x128xf32>
    %196 = vector.extract_strided_slice %193 {offsets = [0, 256], sizes = [1, 128], strides = [1, 1]} : vector<1x512xf32> to vector<1x128xf32>
    %cst_39 = arith.constant 2.000000e+00 : f32
    %197 = vector.broadcast %cst_39 : f32 to vector<1x128xf32>
    %198 = arith.mulf %197, %196 : vector<1x128xf32>
    %cst_40 = arith.constant 1.000000e+00 : f32
    %199 = vector.broadcast %cst_40 : f32 to vector<1x128xf32>
    %200 = arith.subf %198, %199 : vector<1x128xf32>
    %201 = vector.extract_strided_slice %193 {offsets = [0, 384], sizes = [1, 128], strides = [1, 1]} : vector<1x512xf32> to vector<1x128xf32>
    %202 = arith.mulf %195, %182 : vector<1x128xf32>
    %203 = arith.mulf %194, %200 : vector<1x128xf32>
    %204 = arith.addf %202, %203 : vector<1x128xf32>
    %205 = math.tanh %204 : vector<1x128xf32>
    %206 = arith.mulf %201, %205 : vector<1x128xf32>
    %207 = vector.extract_strided_slice %206 {offsets = [0, 64], sizes = [1, 32], strides = [1, 1]} : vector<1x128xf32> to vector<1x32xf32>
    %c0_41 = arith.constant 0 : index
    %c0_42 = arith.constant 0 : index
    %208 = vector.load %arg4[%c0_41, %c0_42] : memref<1x32xf32, #tpu.memory_space<vmem>>, vector<1x32xf32>
    tpu.vector_store %arg4[%c0_41, %c0_42], %207 {strides = array<i32>} : memref<1x32xf32, #tpu.memory_space<vmem>>, vector<1x32xf32>,
    return
  }
}

</mosaic_0001>

<llo_original>
// kernel: tpu_custom_call.1
$region0: #{tpu_custom_call.1}
  #allocation0 [shape = 'u32[]', space=smem, size = 0x4, offset = 0x4, fixed_abs, tag = 'smem constant byte address 0x4 - core index']
  #allocation1 [shape = 'u32[144,128]{1,0:T(1,128)}', space=vmem, size = 0x12000, scoped, tag = 'internal scratch']
  %s0 = inlined_call_operand.vmem [shape: f32[9,1], index: 0, kind: input, shape index: {}]
  %s1 = inlined_call_operand.vmem [shape: f32[1,512], index: 1, kind: input, shape index: {}]
  %s2 = inlined_call_operand.vmem [shape: f32[1,512], index: 2, kind: input, shape index: {}]
  %s3 = inlined_call_operand.hbm [shape: bf16[128,512], index: 3, kind: input, shape index: {}]
  %s4 = inlined_call_operand.hbm [shape: f32[1,32], index: 4, kind: output, shape index: {}]
  %s5 = sld [smem:[#allocation0]]
  $region30: #{tpu_custom_call.1} parent=0
    _
  %s7 = ssub.s32 1, %s5
  %s8 = scalar_select 0, %s7, %s5
  $region1: #{tpu_custom_call.1} parent=0
    #allocation2 [shape = 'u8[131072]{0}', space=vmem, size = 0x20000, scoped, tag = 'input window, operand 3, single buffered']
    #allocation3 [shape = 's32[1]{0}', space=sflag, size = 0x4, scoped, tag = 'scoped memory for tpu_custom_call.1']
    #allocation4 [shape = 's32[1]{0}', space=sflag, size = 0x4, scoped, tag = 'scoped memory for tpu_custom_call.1']
    #allocation5 [shape = 'u8[512]{0}', space=vmem, size = 0x400, scoped, tag = 'output window, operand 0, single buffered']
    %9 = vsyncpa [#allocation3], 0
    %10 = vsyncpa [#allocation4], 0
    // Predicated region
    $region2: #{tpu_custom_call.1} parent=1 // pred_check
      _
    $region3: #{tpu_custom_call.1} parent=1 // pred_check_branch
      %12 = sbr.rel (0) target = $region5
    $region4: #{tpu_custom_call.1} parent=1 // pred_region
      _
    $region5: #{tpu_custom_call.1} parent=1 // pred_fallthru
      _
    // Predicated region
    $region6: #{tpu_custom_call.1} parent=1 // pred_check
      _
    $region7: #{tpu_custom_call.1} parent=1 // pred_check_branch
      %14 = sbr.rel (0) target = $region9
    $region8: #{tpu_custom_call.1} parent=1 // pred_region
      _
    $region9: #{tpu_custom_call.1} parent=1 // pred_fallthru
      _
    // Predicated region
    $region10: #{tpu_custom_call.1} parent=1 // pred_check
      _
    $region11: #{tpu_custom_call.1} parent=1 // pred_check_branch
      %16 = sbr.rel (0) target = $region13
    $region12: #{tpu_custom_call.1} parent=1 // pred_region
      _
    $region13: #{tpu_custom_call.1} parent=1 // pred_fallthru
      _
    // Predicated region
    $region14: #{tpu_custom_call.1} parent=1 // pred_check
      _
    $region15: #{tpu_custom_call.1} parent=1 // pred_check_branch
      %18 = sbr.rel (0) target = $region17
    $region16: #{tpu_custom_call.1} parent=1 // pred_region
      %s20 = ssub.s32 4096, 4096
      %21 = vsyncadd [#allocation3], %s20
      %s22 = sshll.u32 [#allocation2], 4
      %s23 = int_to_ptr.vmem [resolvable:$true] %s22
      %28 = dma.hbm_to_vmem [thread:$0]  %s3, 4096, %s23, [#allocation3], 256, 256, 16
    $region17: #{tpu_custom_call.1} parent=1 // pred_fallthru
      _
    // Predicated region
    $region18: #{tpu_custom_call.1} parent=1 // pred_check
      _
    $region19: #{tpu_custom_call.1} parent=1 // pred_check_branch
      %30 = sbr.rel (0) target = $region21
    $region20: #{tpu_custom_call.1} parent=1 // pred_region
      %31 = dma.done [#allocation3], 4096
    $region21: #{tpu_custom_call.1} parent=1 // pred_fallthru
      _
    %v33 = vld [vmem:[#allocation2] sm:$0xff]
    %v34 = vld [vmem:[#allocation2 + $0x8] sm:$0xff]
    %v35 = vld [vmem:[#allocation2 + $0x10] sm:$0xff]
    %v36 = vld [vmem:[#allocation2 + $0x18] sm:$0xff]
    %v37 = vld [vmem:[#allocation2 + $0x20] sm:$0xff]
    %v38 = vld [vmem:[#allocation2 + $0x28] sm:$0xff]
    %v39 = vld [vmem:[#allocation2 + $0x30] sm:$0xff]
    %v40 = vld [vmem:[#allocation2 + $0x38] sm:$0xff]
    %v41 = vld [vmem:[#allocation2 + $0x40] sm:$0xff]
    %v42 = vld [vmem:[#allocation2 + $0x48] sm:$0xff]
    %v43 = vld [vmem:[#allocation2 + $0x50] sm:$0xff]
    %v44 = vld [vmem:[#allocation2 + $0x58] sm:$0xff]
    %v45 = vld [vmem:[#allocation2 + $0x60] sm:$0xff]
    %v46 = vld [vmem:[#allocation2 + $0x68] sm:$0xff]
    %v47 = vld [vmem:[#allocation2 + $0x70] sm:$0xff]
    %v48 = vld [vmem:[#allocation2 + $0x78] sm:$0xff]
    %v49 = vld [vmem:[#allocation2 + $0x80] sm:$0xff]
    %v50 = vld [vmem:[#allocation2 + $0x88] sm:$0xff]
    %v51 = vld [vmem:[#allocation2 + $0x90] sm:$0xff]
    %v52 = vld [vmem:[#allocation2 + $0x98] sm:$0xff]
    %v53 = vld [vmem:[#allocation2 + $0xa0] sm:$0xff]
    %v54 = vld [vmem:[#allocation2 + $0xa8] sm:$0xff]
    %v55 = vld [vmem:[#allocation2 + $0xb0] sm:$0xff]
    %v56 = vld [vmem:[#allocation2 + $0xb8] sm:$0xff]
    %v57 = vld [vmem:[#allocation2 + $0xc0] sm:$0xff]
    %v58 = vld [vmem:[#allocation2 + $0xc8] sm:$0xff]
    %v59 = vld [vmem:[#allocation2 + $0xd0] sm:$0xff]
    %v60 = vld [vmem:[#allocation2 + $0xd8] sm:$0xff]
    %v61 = vld [vmem:[#allocation2 + $0xe0] sm:$0xff]
    %v62 = vld [vmem:[#allocation2 + $0xe8] sm:$0xff]
    %v63 = vld [vmem:[#allocation2 + $0xf0] sm:$0xff]
    %v64 = vld [vmem:[#allocation2 + $0xf8] sm:$0xff]
    %v65 = vld [vmem:[%s0] sm:$0xff]
    %v66 = vld [vmem:[%s0 + $0x8] sm:$0x1]
    %v67 = vld [vmem:[%s1] sm:$0xf]
    %69 = vset.pattern.permute.xlu0 0
    %70 = vperm.xlu0 %69, %v65
    %v71 = vpop.permute.xlu0 %70
    %74 = vset.pattern.permute.xlu0 0
    %75 = vperm.xlu0 %74, %v66
    %v76 = vpop.permute.xlu0 %75
    %v79 = vlaneseq
    %v80 = vshrl.u32 %v79, 7
    %v81 = vsub.s32 0, %v80
    %v82 = vrot.slane %v67, %v81
    %v83 = vlaneseq
    %v84 = vshrl.u32 %v83, 7
    %v85 = vsub.s32 1, %v84
    %v86 = vrot.slane %v67, %v85
    %v87 = vlaneseq
    %v88 = vshrl.u32 %v87, 7
    %v89 = vsub.s32 2, %v88
    %v90 = vrot.slane %v67, %v89
    %v91 = vlaneseq
    %v92 = vshrl.u32 %v91, 7
    %v93 = vsub.s32 3, %v92
    %v94 = vrot.slane %v67, %v93
    %v99 = vmul.f32 %v71, %v82
    %v100 = vmul.f32 %v71, %v86
    %v101 = vmul.f32 %v71, %v90
    %v102 = vmul.f32 %v71, %v94
    %v103 = vmul.f32 %v76, %v82
    %v104 = vmul.f32 %v76, %v86
    %v105 = vmul.f32 %v76, %v90
    %v106 = vmul.f32 %v76, %v94
    %v107 = vld [vmem:[%s2] sm:$0xf]
    %v109 = vlaneseq
    %v110 = vshrl.u32 %v109, 7
    %v111 = vsub.s32 0, %v110
    %v112 = vrot.slane %v107, %v111
    %v113 = vlaneseq
    %v114 = vshrl.u32 %v113, 7
    %v115 = vsub.s32 1, %v114
    %v116 = vrot.slane %v107, %v115
    %v117 = vlaneseq
    %v118 = vshrl.u32 %v117, 7
    %v119 = vsub.s32 2, %v118
    %v120 = vrot.slane %v107, %v119
    %v121 = vlaneseq
    %v122 = vshrl.u32 %v121, 7
    %v123 = vsub.s32 3, %v122
    %v124 = vrot.slane %v107, %v123
    %v129 = vadd.f32 %v99, %v112
    %v130 = vadd.f32 %v100, %v116
    %v131 = vadd.f32 %v101, %v120
    %v132 = vadd.f32 %v102, %v124
    %v133 = vadd.f32 %v103, %v112
    %v134 = vadd.f32 %v104, %v116
    %v135 = vadd.f32 %v105, %v120
    %v136 = vadd.f32 %v106, %v124
    %v137 = vlaneseq
    %v138 = vand.u32 %v137, 127
    %vm139 = vcmp.lt.s32.totalorder %v138, 64
    %v140 = vsel %vm139, 1, 0
    %v141 = vcvt.s32.f32 %v140
    %v142 = vxor.u32 %v129, 2147483648
    %v143 = vxor.u32 %v131, 2147483648
    %v144 = vxor.u32 %v132, 2147483648
    %v145 = vmul.f32 %v142, 1.442695
    %v146 = vpow.pop %v145
    %v147 = vmul.f32 %v143, 1.442695
    %v148 = vpow.pop %v147
    %v149 = vmul.f32 %v144, 1.442695
    %v150 = vpow.pop %v149
    %v151 = vadd.f32 %v146, 1.0
    %v152 = vadd.f32 %v148, 1.0
    %v153 = vadd.f32 %v150, 1.0
    %v154 = vrcp.pop %v151
    %v155 = vmul.f32 1.0, %v154
    %v156 = vrcp.pop %v152
    %v157 = vmul.f32 1.0, %v156
    %v158 = vrcp.pop %v153
    %v159 = vmul.f32 1.0, %v158
    %v160 = vmul.f32 %v157, 2.0
    %v161 = vsub.f32 %v160, 1.0
    %v162 = vmul.f32 %v155, %v161
    %v163 = vmul.f32 %v162, %v141
    %v164 = vtanh.pop %v163
    %v165 = vmul.f32 %v159, %v164
    %v166 = vpack.c.bf16 %v165, %v165
    %v199 = vunpack.c.l.b16 %v33
    %v200 = vunpack.c.h.b16 %v33
    %v201 = vunpack.c.l.b16 %v34
    %v202 = vunpack.c.h.b16 %v34
    %v203 = vunpack.c.l.b16 %v35
    %v204 = vunpack.c.h.b16 %v35
    %v205 = vunpack.c.l.b16 %v36
    %v206 = vunpack.c.h.b16 %v36
    %v207 = vunpack.c.l.b16 %v37
    %v208 = vunpack.c.h.b16 %v37
    %v209 = vunpack.c.l.b16 %v38
    %v210 = vunpack.c.h.b16 %v38
    %v211 = vunpack.c.l.b16 %v39
    %v212 = vunpack.c.h.b16 %v39
    %v213 = vunpack.c.l.b16 %v40
    %v214 = vunpack.c.h.b16 %v40
    %v215 = vunpack.c.l.b16 %v41
    %v216 = vunpack.c.h.b16 %v41
    %v217 = vunpack.c.l.b16 %v42
    %v218 = vunpack.c.h.b16 %v42
    %v219 = vunpack.c.l.b16 %v43
    %v220 = vunpack.c.h.b16 %v43
    %v221 = vunpack.c.l.b16 %v44
    %v222 = vunpack.c.h.b16 %v44
    %v223 = vunpack.c.l.b16 %v45
    %v224 = vunpack.c.h.b16 %v45
    %v225 = vunpack.c.l.b16 %v46
    %v226 = vunpack.c.h.b16 %v46
    %v227 = vunpack.c.l.b16 %v47
    %v228 = vunpack.c.h.b16 %v47
    %v229 = vunpack.c.l.b16 %v48
    %v230 = vunpack.c.h.b16 %v48
    %v231 = vunpack.c.l.b16 %v49
    %v232 = vunpack.c.h.b16 %v49
    %v233 = vunpack.c.l.b16 %v50
    %v234 = vunpack.c.h.b16 %v50
    %v235 = vunpack.c.l.b16 %v51
    %v236 = vunpack.c.h.b16 %v51
    %v237 = vunpack.c.l.b16 %v52
    %v238 = vunpack.c.h.b16 %v52
    %v239 = vunpack.c.l.b16 %v53
    %v240 = vunpack.c.h.b16 %v53
    %v241 = vunpack.c.l.b16 %v54
    %v242 = vunpack.c.h.b16 %v54
    %v243 = vunpack.c.l.b16 %v55
    %v244 = vunpack.c.h.b16 %v55
    %v245 = vunpack.c.l.b16 %v56
    %v246 = vunpack.c.h.b16 %v56
    %v247 = vunpack.c.l.b16 %v57
    %v248 = vunpack.c.h.b16 %v57
    %v249 = vunpack.c.l.b16 %v58
    %v250 = vunpack.c.h.b16 %v58
    %v251 = vunpack.c.l.b16 %v59
    %v252 = vunpack.c.h.b16 %v59
    %v253 = vunpack.c.l.b16 %v60
    %v254 = vunpack.c.h.b16 %v60
    %v255 = vunpack.c.l.b16 %v61
    %v256 = vunpack.c.h.b16 %v61
    %v257 = vunpack.c.l.b16 %v62
    %v258 = vunpack.c.h.b16 %v62
    %v259 = vunpack.c.l.b16 %v63
    %v260 = vunpack.c.h.b16 %v63
    %v261 = vunpack.c.l.b16 %v64
    %v262 = vunpack.c.h.b16 %v64
    %v263 = vpack.c.b16 %v203, %v199
    %v264 = vpack.c.b16 %v204, %v200
    %v265 = vpack.c.b16 %v205, %v201
    %v266 = vpack.c.b16 %v206, %v202
    %v267 = vpack.c.b16 %v211, %v207
    %v268 = vpack.c.b16 %v212, %v208
    %v269 = vpack.c.b16 %v213, %v209
    %v270 = vpack.c.b16 %v214, %v210
    %v271 = vpack.c.b16 %v219, %v215
    %v272 = vpack.c.b16 %v220, %v216
    %v273 = vpack.c.b16 %v221, %v217
    %v274 = vpack.c.b16 %v222, %v218
    %v275 = vpack.c.b16 %v227, %v223
    %v276 = vpack.c.b16 %v228, %v224
    %v277 = vpack.c.b16 %v229, %v225
    %v278 = vpack.c.b16 %v230, %v226
    %v279 = vpack.c.b16 %v235, %v231
    %v280 = vpack.c.b16 %v236, %v232
    %v281 = vpack.c.b16 %v237, %v233
    %v282 = vpack.c.b16 %v238, %v234
    %v283 = vpack.c.b16 %v243, %v239
    %v284 = vpack.c.b16 %v244, %v240
    %v285 = vpack.c.b16 %v245, %v241
    %v286 = vpack.c.b16 %v246, %v242
    %v287 = vpack.c.b16 %v251, %v247
    %v288 = vpack.c.b16 %v252, %v248
    %v289 = vpack.c.b16 %v253, %v249
    %v290 = vpack.c.b16 %v254, %v250
    %v291 = vpack.c.b16 %v259, %v255
    %v292 = vpack.c.b16 %v260, %v256
    %v293 = vpack.c.b16 %v261, %v257
    %v294 = vpack.c.b16 %v262, %v258
    %v331 = vrot.slane %v129, 1
    %v332 = vrot.slane %v130, 1
    %v333 = vrot.slane %v131, 1
    %v334 = vrot.slane %v132, 1
    %339 = vmatprep.subr.bf16.mxu0 %v292
    %340 = vmatpush1.bf16.msra.mxu0 %v291
    %341 = vmatprep.subr.bf16.mxu0 %v288
    %342 = vmatpush1.bf16.msra.mxu0 %v287
    %343 = vmatprep.subr.bf16.mxu0 %v284
    %344 = vmatpush1.bf16.msra.mxu0 %v283
    %345 = vmatprep.subr.bf16.mxu0 %v280
    %346 = vmatpush1.bf16.msra.mxu0 %v279
    %347 = vmatprep.subr.bf16.mxu0 %v276
    %348 = vmatpush1.bf16.msra.mxu0 %v275
    %349 = vmatprep.subr.bf16.mxu0 %v272
    %350 = vmatpush1.bf16.msra.mxu0 %v271
    %351 = vmatprep.subr.bf16.mxu0 %v268
    %352 = vmatpush1.bf16.msra.mxu0 %v267
    %353 = vmatprep.subr.bf16.mxu0 %v264
    %354 = vmatpush1.bf16.msra.mxu0 %v263
    %355 = vmatprep.subr.bf16.mxu0 0
    %356 = vmatpush2.bf16.msra.mxu0 0
    %357 = vmatprep.subr.bf16.mxu0 0
    %358 = vmatpush2.bf16.msra.mxu0 0
    %359 = vmatprep.subr.bf16.mxu0 0
    %360 = vmatpush2.bf16.msra.mxu0 0
    %361 = vmatprep.subr.bf16.mxu0 0
    %362 = vmatpush2.bf16.msra.mxu0 0
    %363 = vmatprep.subr.bf16.mxu0 0
    %364 = vmatpush2.bf16.msra.mxu0 0
    %365 = vmatprep.subr.bf16.mxu0 0
    %366 = vmatpush2.bf16.msra.mxu0 0
    %367 = vmatprep.subr.bf16.mxu0 0
    %368 = vmatpush2.bf16.msra.mxu0 0
    %369 = vmatprep.subr.bf16.mxu0 0
    %370 = vmatpush2.bf16.msra.mxu0 0
    %371 = vmatprep.mubr.bf16.mxu0 0
    %372 = vmatmul.mubr.bf16.gmra.mxu0 %v166
    %v373 = vpop.f32.mrf.mxu0
    %v374 = vadd.f32 %v331, %v373
    %v375 = vpop.f32.mrf.mxu0
    %v376 = vadd.f32 %v332, %v375
    %v377 = vpop.f32.mrf.mxu0
    %v378 = vpop.f32.mrf.mxu0
    %379 = vdwg.mxu0
    %380 = vmatprep.subr.bf16.mxu0 %v294
    %381 = vmatpush1.bf16.msra.mxu0 %v293
    %382 = vmatprep.subr.bf16.mxu0 %v290
    %383 = vmatpush1.bf16.msra.mxu0 %v289
    %384 = vmatprep.subr.bf16.mxu0 %v286
    %385 = vmatpush1.bf16.msra.mxu0 %v285
    %386 = vmatprep.subr.bf16.mxu0 %v282
    %387 = vmatpush1.bf16.msra.mxu0 %v281
    %388 = vmatprep.subr.bf16.mxu0 %v278
    %389 = vmatpush1.bf16.msra.mxu0 %v277
    %390 = vmatprep.subr.bf16.mxu0 %v274
    %391 = vmatpush1.bf16.msra.mxu0 %v273
    %392 = vmatprep.subr.bf16.mxu0 %v270
    %393 = vmatpush1.bf16.msra.mxu0 %v269
    %394 = vmatprep.subr.bf16.mxu0 %v266
    %395 = vmatpush1.bf16.msra.mxu0 %v265
    %396 = vmatprep.subr.bf16.mxu0 0
    %397 = vmatpush2.bf16.msra.mxu0 0
    %398 = vmatprep.subr.bf16.mxu0 0
    %399 = vmatpush2.bf16.msra.mxu0 0
    %400 = vmatprep.subr.bf16.mxu0 0
    %401 = vmatpush2.bf16.msra.mxu0 0
    %402 = vmatprep.subr.bf16.mxu0 0
    %403 = vmatpush2.bf16.msra.mxu0 0
    %404 = vmatprep.subr.bf16.mxu0 0
    %405 = vmatpush2.bf16.msra.mxu0 0
    %406 = vmatprep.subr.bf16.mxu0 0
    %407 = vmatpush2.bf16.msra.mxu0 0
    %408 = vmatprep.subr.bf16.mxu0 0
    %409 = vmatpush2.bf16.msra.mxu0 0
    %410 = vmatprep.subr.bf16.mxu0 0
    %411 = vmatpush2.bf16.msra.mxu0 0
    %412 = vmatprep.mubr.bf16.mxu0 0
    %413 = vmatmul.mubr.bf16.gmra.mxu0 %v166
    %v414 = vpop.f32.mrf.mxu0
    %v415 = vadd.f32 %v333, %v414
    %v416 = vpop.f32.mrf.mxu0
    %v417 = vadd.f32 %v334, %v416
    %v418 = vpop.f32.mrf.mxu0
    %v419 = vpop.f32.mrf.mxu0
    %420 = vdwg.mxu0
    %v421 = vxor.u32 %v374, 2147483648
    %v422 = vxor.u32 %v376, 2147483648
    %v423 = vxor.u32 %v415, 2147483648
    %v424 = vxor.u32 %v417, 2147483648
    %v425 = vmul.f32 %v421, 1.442695
    %v426 = vpow.pop %v425
    %v427 = vmul.f32 %v422, 1.442695
    %v428 = vpow.pop %v427
    %v429 = vmul.f32 %v423, 1.442695
    %v430 = vpow.pop %v429
    %v431 = vmul.f32 %v424, 1.442695
    %v432 = vpow.pop %v431
    %v433 = vadd.f32 %v426, 1.0
    %v434 = vadd.f32 %v428, 1.0
    %v435 = vadd.f32 %v430, 1.0
    %v436 = vadd.f32 %v432, 1.0
    %v437 = vrcp.pop %v433
    %v438 = vmul.f32 1.0, %v437
    %v439 = vrcp.pop %v434
    %v440 = vmul.f32 1.0, %v439
    %v441 = vrcp.pop %v435
    %v442 = vmul.f32 1.0, %v441
    %v443 = vrcp.pop %v436
    %v444 = vmul.f32 1.0, %v443
    %v445 = vmul.f32 %v442, 2.0
    %v446 = vsub.f32 %v445, 1.0
    %v447 = vmul.f32 %v440, %v163
    %v448 = vmul.f32 %v438, %v446
    %v449 = vadd.f32 %v447, %v448
    %v450 = vtanh.pop %v449
    %v451 = vmul.f32 %v444, %v450
    %v452 = vpack.c.bf16 %v451, %v451
    %v453 = vrot.slane %v129, 2
    %v454 = vrot.slane %v130, 2
    %v455 = vrot.slane %v131, 2
    %v456 = vrot.slane %v132, 2
    %461 = vmatprep.subr.bf16.mxu0 %v292
    %462 = vmatpush1.bf16.msra.mxu0 %v291
    %463 = vmatprep.subr.bf16.mxu0 %v288
    %464 = vmatpush1.bf16.msra.mxu0 %v287
    %465 = vmatprep.subr.bf16.mxu0 %v284
    %466 = vmatpush1.bf16.msra.mxu0 %v283
    %467 = vmatprep.subr.bf16.mxu0 %v280
    %468 = vmatpush1.bf16.msra.mxu0 %v279
    %469 = vmatprep.subr.bf16.mxu0 %v276
    %470 = vmatpush1.bf16.msra.mxu0 %v275
    %471 = vmatprep.subr.bf16.mxu0 %v272
    %472 = vmatpush1.bf16.msra.mxu0 %v271
    %473 = vmatprep.subr.bf16.mxu0 %v268
    %474 = vmatpush1.bf16.msra.mxu0 %v267
    %475 = vmatprep.subr.bf16.mxu0 %v264
    %476 = vmatpush1.bf16.msra.mxu0 %v263
    %477 = vmatprep.subr.bf16.mxu0 0
    %478 = vmatpush2.bf16.msra.mxu0 0
    %479 = vmatprep.subr.bf16.mxu0 0
    %480 = vmatpush2.bf16.msra.mxu0 0
    %481 = vmatprep.subr.bf16.mxu0 0
    %482 = vmatpush2.bf16.msra.mxu0 0
    %483 = vmatprep.subr.bf16.mxu0 0
    %484 = vmatpush2.bf16.msra.mxu0 0
    %485 = vmatprep.subr.bf16.mxu0 0
    %486 = vmatpush2.bf16.msra.mxu0 0
    %487 = vmatprep.subr.bf16.mxu0 0
    %488 = vmatpush2.bf16.msra.mxu0 0
    %489 = vmatprep.subr.bf16.mxu0 0
    %490 = vmatpush2.bf16.msra.mxu0 0
    %491 = vmatprep.subr.bf16.mxu0 0
    %492 = vmatpush2.bf16.msra.mxu0 0
    %493 = vmatprep.mubr.bf16.mxu0 0
    %494 = vmatmul.mubr.bf16.gmra.mxu0 %v452
    %v495 = vpop.f32.mrf.mxu0
    %v496 = vadd.f32 %v453, %v495
    %v497 = vpop.f32.mrf.mxu0
    %v498 = vadd.f32 %v454, %v497
    %v499 = vpop.f32.mrf.mxu0
    %v500 = vpop.f32.mrf.mxu0
    %501 = vdwg.mxu0
    %502 = vmatprep.subr.bf16.mxu0 %v294
    %503 = vmatpush1.bf16.msra.mxu0 %v293
    %504 = vmatprep.subr.bf16.mxu0 %v290
    %505 = vmatpush1.bf16.msra.mxu0 %v289
    %506 = vmatprep.subr.bf16.mxu0 %v286
    %507 = vmatpush1.bf16.msra.mxu0 %v285
    %508 = vmatprep.subr.bf16.mxu0 %v282
    %509 = vmatpush1.bf16.msra.mxu0 %v281
    %510 = vmatprep.subr.bf16.mxu0 %v278
    %511 = vmatpush1.bf16.msra.mxu0 %v277
    %512 = vmatprep.subr.bf16.mxu0 %v274
    %513 = vmatpush1.bf16.msra.mxu0 %v273
    %514 = vmatprep.subr.bf16.mxu0 %v270
    %515 = vmatpush1.bf16.msra.mxu0 %v269
    %516 = vmatprep.subr.bf16.mxu0 %v266
    %517 = vmatpush1.bf16.msra.mxu0 %v265
    %518 = vmatprep.subr.bf16.mxu0 0
    %519 = vmatpush2.bf16.msra.mxu0 0
    %520 = vmatprep.subr.bf16.mxu0 0
    %521 = vmatpush2.bf16.msra.mxu0 0
    %522 = vmatprep.subr.bf16.mxu0 0
    %523 = vmatpush2.bf16.msra.mxu0 0
    %524 = vmatprep.subr.bf16.mxu0 0
    %525 = vmatpush2.bf16.msra.mxu0 0
    %526 = vmatprep.subr.bf16.mxu0 0
    %527 = vmatpush2.bf16.msra.mxu0 0
    %528 = vmatprep.subr.bf16.mxu0 0
    %529 = vmatpush2.bf16.msra.mxu0 0
    %530 = vmatprep.subr.bf16.mxu0 0
    %531 = vmatpush2.bf16.msra.mxu0 0
    %532 = vmatprep.subr.bf16.mxu0 0
    %533 = vmatpush2.bf16.msra.mxu0 0
    %534 = vmatprep.mubr.bf16.mxu0 0
    %535 = vmatmul.mubr.bf16.gmra.mxu0 %v452
    %v536 = vpop.f32.mrf.mxu0
    %v537 = vadd.f32 %v455, %v536
    %v538 = vpop.f32.mrf.mxu0
    %v539 = vadd.f32 %v456, %v538
    %v540 = vpop.f32.mrf.mxu0
    %v541 = vpop.f32.mrf.mxu0
    %542 = vdwg.mxu0
    %v543 = vxor.u32 %v496, 2147483648
    %v544 = vxor.u32 %v498, 2147483648
    %v545 = vxor.u32 %v537, 2147483648
    %v546 = vxor.u32 %v539, 2147483648
    %v547 = vmul.f32 %v543, 1.442695
    %v548 = vpow.pop %v547
    %v549 = vmul.f32 %v544, 1.442695
    %v550 = vpow.pop %v549
    %v551 = vmul.f32 %v545, 1.442695
    %v552 = vpow.pop %v551
    %v553 = vmul.f32 %v546, 1.442695
    %v554 = vpow.pop %v553
    %v555 = vadd.f32 %v548, 1.0
    %v556 = vadd.f32 %v550, 1.0
    %v557 = vadd.f32 %v552, 1.0
    %v558 = vadd.f32 %v554, 1.0
    %v559 = vrcp.pop %v555
    %v560 = vmul.f32 1.0, %v559
    %v561 = vrcp.pop %v556
    %v562 = vmul.f32 1.0, %v561
    %v563 = vrcp.pop %v557
    %v564 = vmul.f32 1.0, %v563
    %v565 = vrcp.pop %v558
    %v566 = vmul.f32 1.0, %v565
    %v567 = vmul.f32 %v564, 2.0
    %v568 = vsub.f32 %v567, 1.0
    %v569 = vmul.f32 %v562, %v449
    %v570 = vmul.f32 %v560, %v568
    %v571 = vadd.f32 %v569, %v570
    %v572 = vtanh.pop %v571
    %v573 = vmul.f32 %v566, %v572
    %v574 = vpack.c.bf16 %v573, %v573
    %v575 = vrot.slane %v129, 3
    %v576 = vrot.slane %v130, 3
    %v577 = vrot.slane %v131, 3
    %v578 = vrot.slane %v132, 3
    %583 = vmatprep.subr.bf16.mxu0 %v292
    %584 = vmatpush1.bf16.msra.mxu0 %v291
    %585 = vmatprep.subr.bf16.mxu0 %v288
    %586 = vmatpush1.bf16.msra.mxu0 %v287
    %587 = vmatprep.subr.bf16.mxu0 %v284
    %588 = vmatpush1.bf16.msra.mxu0 %v283
    %589 = vmatprep.subr.bf16.mxu0 %v280
    %590 = vmatpush1.bf16.msra.mxu0 %v279
    %591 = vmatprep.subr.bf16.mxu0 %v276
    %592 = vmatpush1.bf16.msra.mxu0 %v275
    %593 = vmatprep.subr.bf16.mxu0 %v272
    %594 = vmatpush1.bf16.msra.mxu0 %v271
    %595 = vmatprep.subr.bf16.mxu0 %v268
    %596 = vmatpush1.bf16.msra.mxu0 %v267
    %597 = vmatprep.subr.bf16.mxu0 %v264
    %598 = vmatpush1.bf16.msra.mxu0 %v263
    %599 = vmatprep.subr.bf16.mxu0 0
    %600 = vmatpush2.bf16.msra.mxu0 0
    %601 = vmatprep.subr.bf16.mxu0 0
    %602 = vmatpush2.bf16.msra.mxu0 0
    %603 = vmatprep.subr.bf16.mxu0 0
    %604 = vmatpush2.bf16.msra.mxu0 0
    %605 = vmatprep.subr.bf16.mxu0 0
    %606 = vmatpush2.bf16.msra.mxu0 0
    %607 = vmatprep.subr.bf16.mxu0 0
    %608 = vmatpush2.bf16.msra.mxu0 0
    %609 = vmatprep.subr.bf16.mxu0 0
    %610 = vmatpush2.bf16.msra.mxu0 0
    %611 = vmatprep.subr.bf16.mxu0 0
    %612 = vmatpush2.bf16.msra.mxu0 0
    %613 = vmatprep.subr.bf16.mxu0 0
    %614 = vmatpush2.bf16.msra.mxu0 0
    %615 = vmatprep.mubr.bf16.mxu0 0
    %616 = vmatmul.mubr.bf16.gmra.mxu0 %v574
    %v617 = vpop.f32.mrf.mxu0
    %v618 = vadd.f32 %v575, %v617
    %v619 = vpop.f32.mrf.mxu0
    %v620 = vadd.f32 %v576, %v619
    %v621 = vpop.f32.mrf.mxu0
    %v622 = vpop.f32.mrf.mxu0
    %623 = vdwg.mxu0
    %624 = vmatprep.subr.bf16.mxu0 %v294
    %625 = vmatpush1.bf16.msra.mxu0 %v293
    %626 = vmatprep.subr.bf16.mxu0 %v290
    %627 = vmatpush1.bf16.msra.mxu0 %v289
    %628 = vmatprep.subr.bf16.mxu0 %v286
    %629 = vmatpush1.bf16.msra.mxu0 %v285
    %630 = vmatprep.subr.bf16.mxu0 %v282
    %631 = vmatpush1.bf16.msra.mxu0 %v281
    %632 = vmatprep.subr.bf16.mxu0 %v278
    %633 = vmatpush1.bf16.msra.mxu0 %v277
    %634 = vmatprep.subr.bf16.mxu0 %v274
    %635 = vmatpush1.bf16.msra.mxu0 %v273
    %636 = vmatprep.subr.bf16.mxu0 %v270
    %637 = vmatpush1.bf16.msra.mxu0 %v269
    %638 = vmatprep.subr.bf16.mxu0 %v266
    %639 = vmatpush1.bf16.msra.mxu0 %v265
    %640 = vmatprep.subr.bf16.mxu0 0
    %641 = vmatpush2.bf16.msra.mxu0 0
    %642 = vmatprep.subr.bf16.mxu0 0
    %643 = vmatpush2.bf16.msra.mxu0 0
    %644 = vmatprep.subr.bf16.mxu0 0
    %645 = vmatpush2.bf16.msra.mxu0 0
    %646 = vmatprep.subr.bf16.mxu0 0
    %647 = vmatpush2.bf16.msra.mxu0 0
    %648 = vmatprep.subr.bf16.mxu0 0
    %649 = vmatpush2.bf16.msra.mxu0 0
    %650 = vmatprep.subr.bf16.mxu0 0
    %651 = vmatpush2.bf16.msra.mxu0 0
    %652 = vmatprep.subr.bf16.mxu0 0
    %653 = vmatpush2.bf16.msra.mxu0 0
    %654 = vmatprep.subr.bf16.mxu0 0
    %655 = vmatpush2.bf16.msra.mxu0 0
    %656 = vmatprep.mubr.bf16.mxu0 0
    %657 = vmatmul.mubr.bf16.gmra.mxu0 %v574
    %v658 = vpop.f32.mrf.mxu0
    %v659 = vadd.f32 %v577, %v658
    %v660 = vpop.f32.mrf.mxu0
    %v661 = vadd.f32 %v578, %v660
    %v662 = vpop.f32.mrf.mxu0
    %v663 = vpop.f32.mrf.mxu0
    %664 = vdwg.mxu0
    %v665 = vxor.u32 %v618, 2147483648
    %v666 = vxor.u32 %v620, 2147483648
    %v667 = vxor.u32 %v659, 2147483648
    %v668 = vxor.u32 %v661, 2147483648
    %v669 = vmul.f32 %v665, 1.442695
    %v670 = vpow.pop %v669
    %v671 = vmul.f32 %v666, 1.442695
    %v672 = vpow.pop %v671
    %v673 = vmul.f32 %v667, 1.442695
    %v674 = vpow.pop %v673
    %v675 = vmul.f32 %v668, 1.442695
    %v676 = vpow.pop %v675
    %v677 = vadd.f32 %v670, 1.0
    %v678 = vadd.f32 %v672, 1.0
    %v679 = vadd.f32 %v674, 1.0
    %v680 = vadd.f32 %v676, 1.0
    %v681 = vrcp.pop %v677
    %v682 = vmul.f32 1.0, %v681
    %v683 = vrcp.pop %v678
    %v684 = vmul.f32 1.0, %v683
    %v685 = vrcp.pop %v679
    %v686 = vmul.f32 1.0, %v685
    %v687 = vrcp.pop %v680
    %v688 = vmul.f32 1.0, %v687
    %v689 = vmul.f32 %v686, 2.0
    %v690 = vsub.f32 %v689, 1.0
    %v691 = vmul.f32 %v684, %v571
    %v692 = vmul.f32 %v682, %v690
    %v693 = vadd.f32 %v691, %v692
    %v694 = vtanh.pop %v693
    %v695 = vmul.f32 %v688, %v694
    %v696 = vpack.c.bf16 %v695, %v695
    %v697 = vrot.slane %v129, 4
    %v698 = vrot.slane %v130, 4
    %v699 = vrot.slane %v131, 4
    %v700 = vrot.slane %v132, 4
    %705 = vmatprep.subr.bf16.mxu0 %v292
    %706 = vmatpush1.bf16.msra.mxu0 %v291
    %707 = vmatprep.subr.bf16.mxu0 %v288
    %708 = vmatpush1.bf16.msra.mxu0 %v287
    %709 = vmatprep.subr.bf16.mxu0 %v284
    %710 = vmatpush1.bf16.msra.mxu0 %v283
    %711 = vmatprep.subr.bf16.mxu0 %v280
    %712 = vmatpush1.bf16.msra.mxu0 %v279
    %713 = vmatprep.subr.bf16.mxu0 %v276
    %714 = vmatpush1.bf16.msra.mxu0 %v275
    %715 = vmatprep.subr.bf16.mxu0 %v272
    %716 = vmatpush1.bf16.msra.mxu0 %v271
    %717 = vmatprep.subr.bf16.mxu0 %v268
    %718 = vmatpush1.bf16.msra.mxu0 %v267
    %719 = vmatprep.subr.bf16.mxu0 %v264
    %720 = vmatpush1.bf16.msra.mxu0 %v263
    %721 = vmatprep.subr.bf16.mxu0 0
    %722 = vmatpush2.bf16.msra.mxu0 0
    %723 = vmatprep.subr.bf16.mxu0 0
    %724 = vmatpush2.bf16.msra.mxu0 0
    %725 = vmatprep.subr.bf16.mxu0 0
    %726 = vmatpush2.bf16.msra.mxu0 0
    %727 = vmatprep.subr.bf16.mxu0 0
    %728 = vmatpush2.bf16.msra.mxu0 0
    %729 = vmatprep.subr.bf16.mxu0 0
    %730 = vmatpush2.bf16.msra.mxu0 0
    %731 = vmatprep.subr.bf16.mxu0 0
    %732 = vmatpush2.bf16.msra.mxu0 0
    %733 = vmatprep.subr.bf16.mxu0 0
    %734 = vmatpush2.bf16.msra.mxu0 0
    %735 = vmatprep.subr.bf16.mxu0 0
    %736 = vmatpush2.bf16.msra.mxu0 0
    %737 = vmatprep.mubr.bf16.mxu0 0
    %738 = vmatmul.mubr.bf16.gmra.mxu0 %v696
    %v739 = vpop.f32.mrf.mxu0
    %v740 = vadd.f32 %v697, %v739
    %v741 = vpop.f32.mrf.mxu0
    %v742 = vadd.f32 %v698, %v741
    %v743 = vpop.f32.mrf.mxu0
    %v744 = vpop.f32.mrf.mxu0
    %745 = vdwg.mxu0
    %746 = vmatprep.subr.bf16.mxu0 %v294
    %747 = vmatpush1.bf16.msra.mxu0 %v293
    %748 = vmatprep.subr.bf16.mxu0 %v290
    %749 = vmatpush1.bf16.msra.mxu0 %v289
    %750 = vmatprep.subr.bf16.mxu0 %v286
    %751 = vmatpush1.bf16.msra.mxu0 %v285
    %752 = vmatprep.subr.bf16.mxu0 %v282
    %753 = vmatpush1.bf16.msra.mxu0 %v281
    %754 = vmatprep.subr.bf16.mxu0 %v278
    %755 = vmatpush1.bf16.msra.mxu0 %v277
    %756 = vmatprep.subr.bf16.mxu0 %v274
    %757 = vmatpush1.bf16.msra.mxu0 %v273
    %758 = vmatprep.subr.bf16.mxu0 %v270
    %759 = vmatpush1.bf16.msra.mxu0 %v269
    %760 = vmatprep.subr.bf16.mxu0 %v266
    %761 = vmatpush1.bf16.msra.mxu0 %v265
    %762 = vmatprep.subr.bf16.mxu0 0
    %763 = vmatpush2.bf16.msra.mxu0 0
    %764 = vmatprep.subr.bf16.mxu0 0
    %765 = vmatpush2.bf16.msra.mxu0 0
    %766 = vmatprep.subr.bf16.mxu0 0
    %767 = vmatpush2.bf16.msra.mxu0 0
    %768 = vmatprep.subr.bf16.mxu0 0
    %769 = vmatpush2.bf16.msra.mxu0 0
    %770 = vmatprep.subr.bf16.mxu0 0
    %771 = vmatpush2.bf16.msra.mxu0 0
    %772 = vmatprep.subr.bf16.mxu0 0
    %773 = vmatpush2.bf16.msra.mxu0 0
    %774 = vmatprep.subr.bf16.mxu0 0
    %775 = vmatpush2.bf16.msra.mxu0 0
    %776 = vmatprep.subr.bf16.mxu0 0
    %777 = vmatpush2.bf16.msra.mxu0 0
    %778 = vmatprep.mubr.bf16.mxu0 0
    %779 = vmatmul.mubr.bf16.gmra.mxu0 %v696
    %v780 = vpop.f32.mrf.mxu0
    %v781 = vadd.f32 %v699, %v780
    %v782 = vpop.f32.mrf.mxu0
    %v783 = vadd.f32 %v700, %v782
    %v784 = vpop.f32.mrf.mxu0
    %v785 = vpop.f32.mrf.mxu0
    %786 = vdwg.mxu0
    %v787 = vxor.u32 %v740, 2147483648
    %v788 = vxor.u32 %v742, 2147483648
    %v789 = vxor.u32 %v781, 2147483648
    %v790 = vxor.u32 %v783, 2147483648
    %v791 = vmul.f32 %v787, 1.442695
    %v792 = vpow.pop %v791
    %v793 = vmul.f32 %v788, 1.442695
    %v794 = vpow.pop %v793
    %v795 = vmul.f32 %v789, 1.442695
    %v796 = vpow.pop %v795
    %v797 = vmul.f32 %v790, 1.442695
    %v798 = vpow.pop %v797
    %v799 = vadd.f32 %v792, 1.0
    %v800 = vadd.f32 %v794, 1.0
    %v801 = vadd.f32 %v796, 1.0
    %v802 = vadd.f32 %v798, 1.0
    %v803 = vrcp.pop %v799
    %v804 = vmul.f32 1.0, %v803
    %v805 = vrcp.pop %v800
    %v806 = vmul.f32 1.0, %v805
    %v807 = vrcp.pop %v801
    %v808 = vmul.f32 1.0, %v807
    %v809 = vrcp.pop %v802
    %v810 = vmul.f32 1.0, %v809
    %v811 = vmul.f32 %v808, 2.0
    %v812 = vsub.f32 %v811, 1.0
    %v813 = vmul.f32 %v806, %v693
    %v814 = vmul.f32 %v804, %v812
    %v815 = vadd.f32 %v813, %v814
    %v816 = vtanh.pop %v815
    %v817 = vmul.f32 %v810, %v816
    %v818 = vpack.c.bf16 %v817, %v817
    %v819 = vrot.slane %v129, 5
    %v820 = vrot.slane %v130, 5
    %v821 = vrot.slane %v131, 5
    %v822 = vrot.slane %v132, 5
    %827 = vmatprep.subr.bf16.mxu0 %v292
    %828 = vmatpush1.bf16.msra.mxu0 %v291
    %829 = vmatprep.subr.bf16.mxu0 %v288
    %830 = vmatpush1.bf16.msra.mxu0 %v287
    %831 = vmatprep.subr.bf16.mxu0 %v284
    %832 = vmatpush1.bf16.msra.mxu0 %v283
    %833 = vmatprep.subr.bf16.mxu0 %v280
    %834 = vmatpush1.bf16.msra.mxu0 %v279
    %835 = vmatprep.subr.bf16.mxu0 %v276
    %836 = vmatpush1.bf16.msra.mxu0 %v275
    %837 = vmatprep.subr.bf16.mxu0 %v272
    %838 = vmatpush1.bf16.msra.mxu0 %v271
    %839 = vmatprep.subr.bf16.mxu0 %v268
    %840 = vmatpush1.bf16.msra.mxu0 %v267
    %841 = vmatprep.subr.bf16.mxu0 %v264
    %842 = vmatpush1.bf16.msra.mxu0 %v263
    %843 = vmatprep.subr.bf16.mxu0 0
    %844 = vmatpush2.bf16.msra.mxu0 0
    %845 = vmatprep.subr.bf16.mxu0 0
    %846 = vmatpush2.bf16.msra.mxu0 0
    %847 = vmatprep.subr.bf16.mxu0 0
    %848 = vmatpush2.bf16.msra.mxu0 0
    %849 = vmatprep.subr.bf16.mxu0 0
    %850 = vmatpush2.bf16.msra.mxu0 0
    %851 = vmatprep.subr.bf16.mxu0 0
    %852 = vmatpush2.bf16.msra.mxu0 0
    %853 = vmatprep.subr.bf16.mxu0 0
    %854 = vmatpush2.bf16.msra.mxu0 0
    %855 = vmatprep.subr.bf16.mxu0 0
    %856 = vmatpush2.bf16.msra.mxu0 0
    %857 = vmatprep.subr.bf16.mxu0 0
    %858 = vmatpush2.bf16.msra.mxu0 0
    %859 = vmatprep.mubr.bf16.mxu0 0
    %860 = vmatmul.mubr.bf16.gmra.mxu0 %v818
    %v861 = vpop.f32.mrf.mxu0
    %v862 = vadd.f32 %v819, %v861
    %v863 = vpop.f32.mrf.mxu0
    %v864 = vadd.f32 %v820, %v863
    %v865 = vpop.f32.mrf.mxu0
    %v866 = vpop.f32.mrf.mxu0
    %867 = vdwg.mxu0
    %868 = vmatprep.subr.bf16.mxu0 %v294
    %869 = vmatpush1.bf16.msra.mxu0 %v293
    %870 = vmatprep.subr.bf16.mxu0 %v290
    %871 = vmatpush1.bf16.msra.mxu0 %v289
    %872 = vmatprep.subr.bf16.mxu0 %v286
    %873 = vmatpush1.bf16.msra.mxu0 %v285
    %874 = vmatprep.subr.bf16.mxu0 %v282
    %875 = vmatpush1.bf16.msra.mxu0 %v281
    %876 = vmatprep.subr.bf16.mxu0 %v278
    %877 = vmatpush1.bf16.msra.mxu0 %v277
    %878 = vmatprep.subr.bf16.mxu0 %v274
    %879 = vmatpush1.bf16.msra.mxu0 %v273
    %880 = vmatprep.subr.bf16.mxu0 %v270
    %881 = vmatpush1.bf16.msra.mxu0 %v269
    %882 = vmatprep.subr.bf16.mxu0 %v266
    %883 = vmatpush1.bf16.msra.mxu0 %v265
    %884 = vmatprep.subr.bf16.mxu0 0
    %885 = vmatpush2.bf16.msra.mxu0 0
    %886 = vmatprep.subr.bf16.mxu0 0
    %887 = vmatpush2.bf16.msra.mxu0 0
    %888 = vmatprep.subr.bf16.mxu0 0
    %889 = vmatpush2.bf16.msra.mxu0 0
    %890 = vmatprep.subr.bf16.mxu0 0
    %891 = vmatpush2.bf16.msra.mxu0 0
    %892 = vmatprep.subr.bf16.mxu0 0
    %893 = vmatpush2.bf16.msra.mxu0 0
    %894 = vmatprep.subr.bf16.mxu0 0
    %895 = vmatpush2.bf16.msra.mxu0 0
    %896 = vmatprep.subr.bf16.mxu0 0
    %897 = vmatpush2.bf16.msra.mxu0 0
    %898 = vmatprep.subr.bf16.mxu0 0
    %899 = vmatpush2.bf16.msra.mxu0 0
    %900 = vmatprep.mubr.bf16.mxu0 0
    %901 = vmatmul.mubr.bf16.gmra.mxu0 %v818
    %v902 = vpop.f32.mrf.mxu0
    %v903 = vadd.f32 %v821, %v902
    %v904 = vpop.f32.mrf.mxu0
    %v905 = vadd.f32 %v822, %v904
    %v906 = vpop.f32.mrf.mxu0
    %v907 = vpop.f32.mrf.mxu0
    %908 = vdwg.mxu0
    %v909 = vxor.u32 %v862, 2147483648
    %v910 = vxor.u32 %v864, 2147483648
    %v911 = vxor.u32 %v903, 2147483648
    %v912 = vxor.u32 %v905, 2147483648
    %v913 = vmul.f32 %v909, 1.442695
    %v914 = vpow.pop %v913
    %v915 = vmul.f32 %v910, 1.442695
    %v916 = vpow.pop %v915
    %v917 = vmul.f32 %v911, 1.442695
    %v918 = vpow.pop %v917
    %v919 = vmul.f32 %v912, 1.442695
    %v920 = vpow.pop %v919
    %v921 = vadd.f32 %v914, 1.0
    %v922 = vadd.f32 %v916, 1.0
    %v923 = vadd.f32 %v918, 1.0
    %v924 = vadd.f32 %v920, 1.0
    %v925 = vrcp.pop %v921
    %v926 = vmul.f32 1.0, %v925
    %v927 = vrcp.pop %v922
    %v928 = vmul.f32 1.0, %v927
    %v929 = vrcp.pop %v923
    %v930 = vmul.f32 1.0, %v929
    %v931 = vrcp.pop %v924
    %v932 = vmul.f32 1.0, %v931
    %v933 = vmul.f32 %v930, 2.0
    %v934 = vsub.f32 %v933, 1.0
    %v935 = vmul.f32 %v928, %v815
    %v936 = vmul.f32 %v926, %v934
    %v937 = vadd.f32 %v935, %v936
    %v938 = vtanh.pop %v937
    %v939 = vmul.f32 %v932, %v938
    %v940 = vpack.c.bf16 %v939, %v939
    %v941 = vrot.slane %v129, 6
    %v942 = vrot.slane %v130, 6
    %v943 = vrot.slane %v131, 6
    %v944 = vrot.slane %v132, 6
    %949 = vmatprep.subr.bf16.mxu0 %v292
    %950 = vmatpush1.bf16.msra.mxu0 %v291
    %951 = vmatprep.subr.bf16.mxu0 %v288
    %952 = vmatpush1.bf16.msra.mxu0 %v287
    %953 = vmatprep.subr.bf16.mxu0 %v284
    %954 = vmatpush1.bf16.msra.mxu0 %v283
    %955 = vmatprep.subr.bf16.mxu0 %v280
    %956 = vmatpush1.bf16.msra.mxu0 %v279
    %957 = vmatprep.subr.bf16.mxu0 %v276
    %958 = vmatpush1.bf16.msra.mxu0 %v275
    %959 = vmatprep.subr.bf16.mxu0 %v272
    %960 = vmatpush1.bf16.msra.mxu0 %v271
    %961 = vmatprep.subr.bf16.mxu0 %v268
    %962 = vmatpush1.bf16.msra.mxu0 %v267
    %963 = vmatprep.subr.bf16.mxu0 %v264
    %964 = vmatpush1.bf16.msra.mxu0 %v263
    %965 = vmatprep.subr.bf16.mxu0 0
    %966 = vmatpush2.bf16.msra.mxu0 0
    %967 = vmatprep.subr.bf16.mxu0 0
    %968 = vmatpush2.bf16.msra.mxu0 0
    %969 = vmatprep.subr.bf16.mxu0 0
    %970 = vmatpush2.bf16.msra.mxu0 0
    %971 = vmatprep.subr.bf16.mxu0 0
    %972 = vmatpush2.bf16.msra.mxu0 0
    %973 = vmatprep.subr.bf16.mxu0 0
    %974 = vmatpush2.bf16.msra.mxu0 0
    %975 = vmatprep.subr.bf16.mxu0 0
    %976 = vmatpush2.bf16.msra.mxu0 0
    %977 = vmatprep.subr.bf16.mxu0 0
    %978 = vmatpush2.bf16.msra.mxu0 0
    %979 = vmatprep.subr.bf16.mxu0 0
    %980 = vmatpush2.bf16.msra.mxu0 0
    %981 = vmatprep.mubr.bf16.mxu0 0
    %982 = vmatmul.mubr.bf16.gmra.mxu0 %v940
    %v983 = vpop.f32.mrf.mxu0
    %v984 = vadd.f32 %v941, %v983
    %v985 = vpop.f32.mrf.mxu0
    %v986 = vadd.f32 %v942, %v985
    %v987 = vpop.f32.mrf.mxu0
    %v988 = vpop.f32.mrf.mxu0
    %989 = vdwg.mxu0
    %990 = vmatprep.subr.bf16.mxu0 %v294
    %991 = vmatpush1.bf16.msra.mxu0 %v293
    %992 = vmatprep.subr.bf16.mxu0 %v290
    %993 = vmatpush1.bf16.msra.mxu0 %v289
    %994 = vmatprep.subr.bf16.mxu0 %v286
    %995 = vmatpush1.bf16.msra.mxu0 %v285
    %996 = vmatprep.subr.bf16.mxu0 %v282
    %997 = vmatpush1.bf16.msra.mxu0 %v281
    %998 = vmatprep.subr.bf16.mxu0 %v278
    %999 = vmatpush1.bf16.msra.mxu0 %v277
    %1000 = vmatprep.subr.bf16.mxu0 %v274
    %1001 = vmatpush1.bf16.msra.mxu0 %v273
    %1002 = vmatprep.subr.bf16.mxu0 %v270
    %1003 = vmatpush1.bf16.msra.mxu0 %v269
    %1004 = vmatprep.subr.bf16.mxu0 %v266
    %1005 = vmatpush1.bf16.msra.mxu0 %v265
    %1006 = vmatprep.subr.bf16.mxu0 0
    %1007 = vmatpush2.bf16.msra.mxu0 0
    %1008 = vmatprep.subr.bf16.mxu0 0
    %1009 = vmatpush2.bf16.msra.mxu0 0
    %1010 = vmatprep.subr.bf16.mxu0 0
    %1011 = vmatpush2.bf16.msra.mxu0 0
    %1012 = vmatprep.subr.bf16.mxu0 0
    %1013 = vmatpush2.bf16.msra.mxu0 0
    %1014 = vmatprep.subr.bf16.mxu0 0
    %1015 = vmatpush2.bf16.msra.mxu0 0
    %1016 = vmatprep.subr.bf16.mxu0 0
    %1017 = vmatpush2.bf16.msra.mxu0 0
    %1018 = vmatprep.subr.bf16.mxu0 0
    %1019 = vmatpush2.bf16.msra.mxu0 0
    %1020 = vmatprep.subr.bf16.mxu0 0
    %1021 = vmatpush2.bf16.msra.mxu0 0
    %1022 = vmatprep.mubr.bf16.mxu0 0
    %1023 = vmatmul.mubr.bf16.gmra.mxu0 %v940
    %v1024 = vpop.f32.mrf.mxu0
    %v1025 = vadd.f32 %v943, %v1024
    %v1026 = vpop.f32.mrf.mxu0
    %v1027 = vadd.f32 %v944, %v1026
    %v1028 = vpop.f32.mrf.mxu0
    %v1029 = vpop.f32.mrf.mxu0
    %1030 = vdwg.mxu0
    %v1031 = vxor.u32 %v984, 2147483648
    %v1032 = vxor.u32 %v986, 2147483648
    %v1033 = vxor.u32 %v1025, 2147483648
    %v1034 = vxor.u32 %v1027, 2147483648
    %v1035 = vmul.f32 %v1031, 1.442695
    %v1036 = vpow.pop %v1035
    %v1037 = vmul.f32 %v1032, 1.442695
    %v1038 = vpow.pop %v1037
    %v1039 = vmul.f32 %v1033, 1.442695
    %v1040 = vpow.pop %v1039
    %v1041 = vmul.f32 %v1034, 1.442695
    %v1042 = vpow.pop %v1041
    %v1043 = vadd.f32 %v1036, 1.0
    %v1044 = vadd.f32 %v1038, 1.0
    %v1045 = vadd.f32 %v1040, 1.0
    %v1046 = vadd.f32 %v1042, 1.0
    %v1047 = vrcp.pop %v1043
    %v1048 = vmul.f32 1.0, %v1047
    %v1049 = vrcp.pop %v1044
    %v1050 = vmul.f32 1.0, %v1049
    %v1051 = vrcp.pop %v1045
    %v1052 = vmul.f32 1.0, %v1051
    %v1053 = vrcp.pop %v1046
    %v1054 = vmul.f32 1.0, %v1053
    %v1055 = vmul.f32 %v1052, 2.0
    %v1056 = vsub.f32 %v1055, 1.0
    %v1057 = vmul.f32 %v1050, %v937
    %v1058 = vmul.f32 %v1048, %v1056
    %v1059 = vadd.f32 %v1057, %v1058
    %v1060 = vtanh.pop %v1059
    %v1061 = vmul.f32 %v1054, %v1060
    %v1062 = vpack.c.bf16 %v1061, %v1061
    %v1063 = vrot.slane %v129, 7
    %v1064 = vrot.slane %v130, 7
    %v1065 = vrot.slane %v131, 7
    %v1066 = vrot.slane %v132, 7
    %1071 = vmatprep.subr.bf16.mxu0 %v292
    %1072 = vmatpush1.bf16.msra.mxu0 %v291
    %1073 = vmatprep.subr.bf16.mxu0 %v288
    %1074 = vmatpush1.bf16.msra.mxu0 %v287
    %1075 = vmatprep.subr.bf16.mxu0 %v284
    %1076 = vmatpush1.bf16.msra.mxu0 %v283
    %1077 = vmatprep.subr.bf16.mxu0 %v280
    %1078 = vmatpush1.bf16.msra.mxu0 %v279
    %1079 = vmatprep.subr.bf16.mxu0 %v276
    %1080 = vmatpush1.bf16.msra.mxu0 %v275
    %1081 = vmatprep.subr.bf16.mxu0 %v272
    %1082 = vmatpush1.bf16.msra.mxu0 %v271
    %1083 = vmatprep.subr.bf16.mxu0 %v268
    %1084 = vmatpush1.bf16.msra.mxu0 %v267
    %1085 = vmatprep.subr.bf16.mxu0 %v264
    %1086 = vmatpush1.bf16.msra.mxu0 %v263
    %1087 = vmatprep.subr.bf16.mxu0 0
    %1088 = vmatpush2.bf16.msra.mxu0 0
    %1089 = vmatprep.subr.bf16.mxu0 0
    %1090 = vmatpush2.bf16.msra.mxu0 0
    %1091 = vmatprep.subr.bf16.mxu0 0
    %1092 = vmatpush2.bf16.msra.mxu0 0
    %1093 = vmatprep.subr.bf16.mxu0 0
    %1094 = vmatpush2.bf16.msra.mxu0 0
    %1095 = vmatprep.subr.bf16.mxu0 0
    %1096 = vmatpush2.bf16.msra.mxu0 0
    %1097 = vmatprep.subr.bf16.mxu0 0
    %1098 = vmatpush2.bf16.msra.mxu0 0
    %1099 = vmatprep.subr.bf16.mxu0 0
    %1100 = vmatpush2.bf16.msra.mxu0 0
    %1101 = vmatprep.subr.bf16.mxu0 0
    %1102 = vmatpush2.bf16.msra.mxu0 0
    %1103 = vmatprep.mubr.bf16.mxu0 0
    %1104 = vmatmul.mubr.bf16.gmra.mxu0 %v1062
    %v1105 = vpop.f32.mrf.mxu0
    %v1106 = vadd.f32 %v1063, %v1105
    %v1107 = vpop.f32.mrf.mxu0
    %v1108 = vadd.f32 %v1064, %v1107
    %v1109 = vpop.f32.mrf.mxu0
    %v1110 = vpop.f32.mrf.mxu0
    %1111 = vdwg.mxu0
    %1112 = vmatprep.subr.bf16.mxu0 %v294
    %1113 = vmatpush1.bf16.msra.mxu0 %v293
    %1114 = vmatprep.subr.bf16.mxu0 %v290
    %1115 = vmatpush1.bf16.msra.mxu0 %v289
    %1116 = vmatprep.subr.bf16.mxu0 %v286
    %1117 = vmatpush1.bf16.msra.mxu0 %v285
    %1118 = vmatprep.subr.bf16.mxu0 %v282
    %1119 = vmatpush1.bf16.msra.mxu0 %v281
    %1120 = vmatprep.subr.bf16.mxu0 %v278
    %1121 = vmatpush1.bf16.msra.mxu0 %v277
    %1122 = vmatprep.subr.bf16.mxu0 %v274
    %1123 = vmatpush1.bf16.msra.mxu0 %v273
    %1124 = vmatprep.subr.bf16.mxu0 %v270
    %1125 = vmatpush1.bf16.msra.mxu0 %v269
    %1126 = vmatprep.subr.bf16.mxu0 %v266
    %1127 = vmatpush1.bf16.msra.mxu0 %v265
    %1128 = vmatprep.subr.bf16.mxu0 0
    %1129 = vmatpush2.bf16.msra.mxu0 0
    %1130 = vmatprep.subr.bf16.mxu0 0
    %1131 = vmatpush2.bf16.msra.mxu0 0
    %1132 = vmatprep.subr.bf16.mxu0 0
    %1133 = vmatpush2.bf16.msra.mxu0 0
    %1134 = vmatprep.subr.bf16.mxu0 0
    %1135 = vmatpush2.bf16.msra.mxu0 0
    %1136 = vmatprep.subr.bf16.mxu0 0
    %1137 = vmatpush2.bf16.msra.mxu0 0
    %1138 = vmatprep.subr.bf16.mxu0 0
    %1139 = vmatpush2.bf16.msra.mxu0 0
    %1140 = vmatprep.subr.bf16.mxu0 0
    %1141 = vmatpush2.bf16.msra.mxu0 0
    %1142 = vmatprep.subr.bf16.mxu0 0
    %1143 = vmatpush2.bf16.msra.mxu0 0
    %1144 = vmatprep.mubr.bf16.mxu0 0
    %1145 = vmatmul.mubr.bf16.gmra.mxu0 %v1062
    %v1146 = vpop.f32.mrf.mxu0
    %v1147 = vadd.f32 %v1065, %v1146
    %v1148 = vpop.f32.mrf.mxu0
    %v1149 = vadd.f32 %v1066, %v1148
    %v1150 = vpop.f32.mrf.mxu0
    %v1151 = vpop.f32.mrf.mxu0
    %1152 = vdwg.mxu0
    %v1153 = vxor.u32 %v1106, 2147483648
    %v1154 = vxor.u32 %v1108, 2147483648
    %v1155 = vxor.u32 %v1147, 2147483648
    %v1156 = vxor.u32 %v1149, 2147483648
    %v1157 = vmul.f32 %v1153, 1.442695
    %v1158 = vpow.pop %v1157
    %v1159 = vmul.f32 %v1154, 1.442695
    %v1160 = vpow.pop %v1159
    %v1161 = vmul.f32 %v1155, 1.442695
    %v1162 = vpow.pop %v1161
    %v1163 = vmul.f32 %v1156, 1.442695
    %v1164 = vpow.pop %v1163
    %v1165 = vadd.f32 %v1158, 1.0
    %v1166 = vadd.f32 %v1160, 1.0
    %v1167 = vadd.f32 %v1162, 1.0
    %v1168 = vadd.f32 %v1164, 1.0
    %v1169 = vrcp.pop %v1165
    %v1170 = vmul.f32 1.0, %v1169
    %v1171 = vrcp.pop %v1166
    %v1172 = vmul.f32 1.0, %v1171
    %v1173 = vrcp.pop %v1167
    %v1174 = vmul.f32 1.0, %v1173
    %v1175 = vrcp.pop %v1168
    %v1176 = vmul.f32 1.0, %v1175
    %v1177 = vmul.f32 %v1174, 2.0
    %v1178 = vsub.f32 %v1177, 1.0
    %v1179 = vmul.f32 %v1172, %v1059
    %v1180 = vmul.f32 %v1170, %v1178
    %v1181 = vadd.f32 %v1179, %v1180
    %v1182 = vtanh.pop %v1181
    %v1183 = vmul.f32 %v1176, %v1182
    %v1184 = vpack.c.bf16 %v1183, %v1183
    %1185 = vmatprep.subr.bf16.mxu0 %v292
    %1186 = vmatpush1.bf16.msra.mxu0 %v291
    %1187 = vmatprep.subr.bf16.mxu0 %v288
    %1188 = vmatpush1.bf16.msra.mxu0 %v287
    %1189 = vmatprep.subr.bf16.mxu0 %v284
    %1190 = vmatpush1.bf16.msra.mxu0 %v283
    %1191 = vmatprep.subr.bf16.mxu0 %v280
    %1192 = vmatpush1.bf16.msra.mxu0 %v279
    %1193 = vmatprep.subr.bf16.mxu0 %v276
    %1194 = vmatpush1.bf16.msra.mxu0 %v275
    %1195 = vmatprep.subr.bf16.mxu0 %v272
    %1196 = vmatpush1.bf16.msra.mxu0 %v271
    %1197 = vmatprep.subr.bf16.mxu0 %v268
    %1198 = vmatpush1.bf16.msra.mxu0 %v267
    %1199 = vmatprep.subr.bf16.mxu0 %v264
    %1200 = vmatpush1.bf16.msra.mxu0 %v263
    %1201 = vmatprep.subr.bf16.mxu0 0
    %1202 = vmatpush2.bf16.msra.mxu0 0
    %1203 = vmatprep.subr.bf16.mxu0 0
    %1204 = vmatpush2.bf16.msra.mxu0 0
    %1205 = vmatprep.subr.bf16.mxu0 0
    %1206 = vmatpush2.bf16.msra.mxu0 0
    %1207 = vmatprep.subr.bf16.mxu0 0
    %1208 = vmatpush2.bf16.msra.mxu0 0
    %1209 = vmatprep.subr.bf16.mxu0 0
    %1210 = vmatpush2.bf16.msra.mxu0 0
    %1211 = vmatprep.subr.bf16.mxu0 0
    %1212 = vmatpush2.bf16.msra.mxu0 0
    %1213 = vmatprep.subr.bf16.mxu0 0
    %1214 = vmatpush2.bf16.msra.mxu0 0
    %1215 = vmatprep.subr.bf16.mxu0 0
    %1216 = vmatpush2.bf16.msra.mxu0 0
    %1217 = vmatprep.mubr.bf16.mxu0 0
    %1218 = vmatmul.mubr.bf16.gmra.mxu0 %v1184
    %v1219 = vpop.f32.mrf.mxu0
    %v1220 = vadd.f32 %v133, %v1219
    %v1221 = vpop.f32.mrf.mxu0
    %v1222 = vadd.f32 %v134, %v1221
    %v1223 = vpop.f32.mrf.mxu0
    %v1224 = vpop.f32.mrf.mxu0
    %1225 = vdwg.mxu0
    %1226 = vmatprep.subr.bf16.mxu0 %v294
    %1227 = vmatpush1.bf16.msra.mxu0 %v293
    %1228 = vmatprep.subr.bf16.mxu0 %v290
    %1229 = vmatpush1.bf16.msra.mxu0 %v289
    %1230 = vmatprep.subr.bf16.mxu0 %v286
    %1231 = vmatpush1.bf16.msra.mxu0 %v285
    %1232 = vmatprep.subr.bf16.mxu0 %v282
    %1233 = vmatpush1.bf16.msra.mxu0 %v281
    %1234 = vmatprep.subr.bf16.mxu0 %v278
    %1235 = vmatpush1.bf16.msra.mxu0 %v277
    %1236 = vmatprep.subr.bf16.mxu0 %v274
    %1237 = vmatpush1.bf16.msra.mxu0 %v273
    %1238 = vmatprep.subr.bf16.mxu0 %v270
    %1239 = vmatpush1.bf16.msra.mxu0 %v269
    %1240 = vmatprep.subr.bf16.mxu0 %v266
    %1241 = vmatpush1.bf16.msra.mxu0 %v265
    %1242 = vmatprep.subr.bf16.mxu0 0
    %1243 = vmatpush2.bf16.msra.mxu0 0
    %1244 = vmatprep.subr.bf16.mxu0 0
    %1245 = vmatpush2.bf16.msra.mxu0 0
    %1246 = vmatprep.subr.bf16.mxu0 0
    %1247 = vmatpush2.bf16.msra.mxu0 0
    %1248 = vmatprep.subr.bf16.mxu0 0
    %1249 = vmatpush2.bf16.msra.mxu0 0
    %1250 = vmatprep.subr.bf16.mxu0 0
    %1251 = vmatpush2.bf16.msra.mxu0 0
    %1252 = vmatprep.subr.bf16.mxu0 0
    %1253 = vmatpush2.bf16.msra.mxu0 0
    %1254 = vmatprep.subr.bf16.mxu0 0
    %1255 = vmatpush2.bf16.msra.mxu0 0
    %1256 = vmatprep.subr.bf16.mxu0 0
    %1257 = vmatpush2.bf16.msra.mxu0 0
    %1258 = vmatprep.mubr.bf16.mxu0 0
    %1259 = vmatmul.mubr.bf16.gmra.mxu0 %v1184
    %v1260 = vpop.f32.mrf.mxu0
    %v1261 = vadd.f32 %v135, %v1260
    %v1262 = vpop.f32.mrf.mxu0
    %v1263 = vadd.f32 %v136, %v1262
    %v1264 = vpop.f32.mrf.mxu0
    %v1265 = vpop.f32.mrf.mxu0
    %1266 = vdwg.mxu0
    %v1267 = vxor.u32 %v1220, 2147483648
    %v1268 = vxor.u32 %v1222, 2147483648
    %v1269 = vxor.u32 %v1261, 2147483648
    %v1270 = vxor.u32 %v1263, 2147483648
    %v1271 = vmul.f32 %v1267, 1.442695
    %v1272 = vpow.pop %v1271
    %v1273 = vmul.f32 %v1268, 1.442695
    %v1274 = vpow.pop %v1273
    %v1275 = vmul.f32 %v1269, 1.442695
    %v1276 = vpow.pop %v1275
    %v1277 = vmul.f32 %v1270, 1.442695
    %v1278 = vpow.pop %v1277
    %v1279 = vadd.f32 %v1272, 1.0
    %v1280 = vadd.f32 %v1274, 1.0
    %v1281 = vadd.f32 %v1276, 1.0
    %v1282 = vadd.f32 %v1278, 1.0
    %v1283 = vrcp.pop %v1279
    %v1284 = vmul.f32 1.0, %v1283
    %v1285 = vrcp.pop %v1280
    %v1286 = vmul.f32 1.0, %v1285
    %v1287 = vrcp.pop %v1281
    %v1288 = vmul.f32 1.0, %v1287
    %v1289 = vrcp.pop %v1282
    %v1290 = vmul.f32 1.0, %v1289
    %v1291 = vmul.f32 %v1288, 2.0
    %v1292 = vsub.f32 %v1291, 1.0
    %v1293 = vmul.f32 %v1286, %v1181
    %v1294 = vmul.f32 %v1284, %v1292
    %v1295 = vadd.f32 %v1293, %v1294
    %v1296 = vtanh.pop %v1295
    %v1297 = vmul.f32 %v1290, %v1296
    %1299 = vrot.lane.b32.xlu0 %v1297, 64
    %v1300 = vpop.permute.xlu0 %1299
    %vm1302 = vcmask 253952
    %1303 = vst.msk [vmem:[#allocation5] sm:$0x1] %vm1302, %v1300
    // Predicated region
    $region22: #{tpu_custom_call.1} parent=1 // pred_check
      _
    $region23: #{tpu_custom_call.1} parent=1 // pred_check_branch
      %1305 = sbr.rel (0) target = $region25
    $region24: #{tpu_custom_call.1} parent=1 // pred_region
      %s1307 = ssub.s32 16, 16
      %1308 = vsyncadd [#allocation4], %s1307
      %s1310 = sshll.u32 [#allocation5], 4
      %s1311 = int_to_ptr.vmem [resolvable:$true] %s1310
      %1313 = dma.vmem_to_hbm [thread:$0]  %s1311, 16, %s4, [#allocation4]
    $region25: #{tpu_custom_call.1} parent=1 // pred_fallthru
      _
    // Predicated region
    $region26: #{tpu_custom_call.1} parent=1 // pred_check
      _
    $region27: #{tpu_custom_call.1} parent=1 // pred_check_branch
      %1315 = sbr.rel (0) target = $region29
    $region28: #{tpu_custom_call.1} parent=1 // pred_region
      %1316 = dma.done [#allocation4], 16
    $region29: #{tpu_custom_call.1} parent=1 // pred_fallthru
      _
    %1317 = vsyncpa [#allocation3], 1
    %1318 = vsyncpa [#allocation4], 1

</llo_original>
